<compile_context>
chip_gen: v7x
topology: tpu7x:2x2x1
jax: 0.10.0
libtpu: 0.0.40
codegen_flags: <defaults>
</compile_context>

<pallas_src>
import functools

import jax
import jax.numpy as jnp
from jax import lax
from jax.experimental import pallas as pl
from jax.experimental.pallas import tpu as pltpu

_EPS = 1e-5      # InstanceNorm2d default eps
_LANE = 128
_BASE = 128      # left lane-margin in front of the flat padded plane


def _round_up(v, m):
    return (v + m - 1) // m * m


def _default_batch_block(n):
    """Largest divisor of n (capped at 8) that still leaves >= 2 grid steps."""
    best = 1
    for d in range(1, min(n, 8) + 1):
        if n % d == 0 and (n // d >= 2 or n == 1):
            best = d
    return best


def _resblock_kernel(xm_ref, masks_ref, w1_ref, w2_ref, out_ref,
                     hm_ref, stack_ref, *, C, H, W, NB, lacc):
    """One batch block (NB samples) per grid step, flat (C, lanes) layout.

    xm_ref   : (NB, C, lsrc) f32  reflect-padded input planes, flattened,
                                  interior starting at lane _BASE
    masks_ref: (3, lacc)     f32  [interior, padded-col-0, padded-col-last]
    w*_ref   : (C, 9*C)      bf16 weight slab, index [co, (di*3+dj)*C + ci]
    out_ref  : (NB, C, lacc) f32  result in the flat padded layout
    hm_ref   : (NB, C, lsrc) f32  scratch: reflect-padded intermediate
    stack_ref: (9*C, NB*lacc) f32 scratch: stacked tap windows (conv RHS)
    """
    Hp, Wp = H + 2, W + 2
    inv_n = 1.0 / float(H * W)
    # tap offsets inside the flat padded plane (row-major, row stride Wp)
    offs = [(di - 1) * Wp + (dj - 1) for di in range(3) for dj in range(3)]

    imask = masks_ref[0:1, :] > 0.5     # (1, lacc) interior positions
    col0m = masks_ref[1:2, :] > 0.5     # (1, lacc) padded column 0
    colLm = masks_ref[2:3, :] > 0.5     # (1, lacc) padded column Wp-1

    def conv3x3(src_ref, w_ref):
        # Stack the 9 shifted tap windows of every sample (ref reads at static
        # lane offsets, lane-aligned stores) and do ONE bf16 MXU matmul:
        #   (C, 9C) @ (9C, NB*lacc) -> (C, NB*lacc), f32 accumulate.
        for b in range(NB):
            for t, off in enumerate(offs):
                stack_ref[t * C:(t + 1) * C, b * lacc:(b + 1) * lacc] = (
                    src_ref[b, :, _BASE + off:_BASE + off + lacc])
        return jnp.dot(w_ref[...], stack_ref[...].astype(jnp.bfloat16),
                       preferred_element_type=jnp.float32)

    def instance_norm(acc):
        # single masked pass over the H*W interior (f32 stats)
        accm = jnp.where(imask, acc, 0.0)
        s1 = jnp.sum(accm, axis=1, keepdims=True)
        s2 = jnp.sum(accm * accm, axis=1, keepdims=True)
        mean = s1 * inv_n
        var = jnp.maximum(s2 * inv_n - mean * mean, 0.0)
        return (acc - mean) * lax.rsqrt(var + _EPS)

    # Zero only the two 128-lane margins of the scratch (the interior is fully
    # overwritten below).  Margin values only feed conv-2 outputs that are
    # masked/discarded, but keep them finite.  Tiny stores; done every step so
    # megacore grid sharding (program_id 0 absent on core 1) stays safe.
    hm_ref[:, :, 0:_BASE] = jnp.zeros((NB, C, _BASE), jnp.float32)
    hm_ref[:, :, _BASE + lacc:_BASE + lacc + _LANE] = jnp.zeros(
        (NB, C, _LANE), jnp.float32)

    # ---- stage 1: Conv3x3 -> InstanceNorm -> ReLU (all samples, one dot) ---
    acc1 = conv3x3(xm_ref, w1_ref)                       # (C, NB*lacc) f32

    for b in range(NB):
        h = jnp.maximum(instance_norm(acc1[:, b * lacc:(b + 1) * lacc]), 0.0)
        # in-kernel ReflectionPad2d(1) of h (flat layout, stays in VMEM)
        hm_ref[b, :, _BASE:_BASE + lacc] = h
        # padded row 0 <- row 2, padded row Hp-1 <- row Hp-3 (contiguous)
        hm_ref[b, :, _BASE:_BASE + Wp] = (
            hm_ref[b, :, _BASE + 2 * Wp:_BASE + 3 * Wp])
        hm_ref[b, :, _BASE + (Hp - 1) * Wp:_BASE + Hp * Wp] = (
            hm_ref[b, :, _BASE + (Hp - 3) * Wp:_BASE + (Hp - 2) * Wp])
        # padded col 0 <- col 2, padded col Wp-1 <- col Wp-3 (masked shifts)
        cur = hm_ref[b, :, _BASE:_BASE + lacc]
        right2 = hm_ref[b, :, _BASE + 2:_BASE + 2 + lacc]
        left2 = hm_ref[b, :, _BASE - 2:_BASE - 2 + lacc]
        cur = jnp.where(col0m, right2, cur)
        cur = jnp.where(colLm, left2, cur)
        hm_ref[b, :, _BASE:_BASE + lacc] = cur

    # ---- stage 2: Conv3x3 -> InstanceNorm -> residual add ------------------
    acc2 = conv3x3(hm_ref, w2_ref)                       # (C, NB*lacc) f32
    for b in range(NB):
        y = instance_norm(acc2[:, b * lacc:(b + 1) * lacc])
        out_ref[b, :, :] = xm_ref[b, :, _BASE:_BASE + lacc] + y


def residual_block(x, w1, b1, w2, b2, *, batch_block=None):
    """x: (N, C, H, W) f32; w*: (C, C, 3, 3) OIHW; b*: (C,). -> (N, C, H, W).

    Conv biases are accepted for API parity but never used: a per-channel
    constant added before InstanceNorm is exactly cancelled by the mean
    subtraction (this is an exact identity, not an approximation).
    """
    del b1, b2
    N, C, H, W = x.shape
    Hp, Wp = H + 2, W + 2
    P = Hp * Wp
    assert Wp + 1 <= min(_BASE, _LANE), (
        "spatial width too large for the fixed lane margins")
    lacc = _round_up(P, _LANE)          # lane-dense working width
    lsrc = _BASE + lacc + _LANE         # margins on both sides for tap shifts
    Cp = _round_up(C, 8)                # pad channels to a sublane multiple
    nb = batch_block if batch_block is not None else _default_batch_block(N)
    assert N % nb == 0, "batch_block must divide the batch size"

    x = x.astype(jnp.float32)
    # input ReflectionPad2d + channel pad + flatten (tiny XLA glue)
    xc = jnp.pad(x, ((0, 0), (0, Cp - C), (0, 0), (0, 0)))
    xpad = jnp.pad(xc, ((0, 0), (0, 0), (1, 1), (1, 1)), mode="reflect")
    xm = jnp.pad(xpad.reshape(N, Cp, P),
                 ((0, 0), (0, 0), (_BASE, lsrc - _BASE - P)))

    # position masks in the flat padded plane (channel-independent constants)
    q = jnp.arange(lacc)
    row, col, valid = q // Wp, q % Wp, q < P
    interior = valid & (row >= 1) & (row <= H) & (col >= 1) & (col <= W)
    col0 = valid & (col == 0)
    colL = valid & (col == Wp - 1)
    masks = jnp.stack([interior, col0, colL]).astype(jnp.float32)   # (3, lacc)

    def _wslab(w):
        wp = jnp.pad(w, ((0, Cp - C), (0, Cp - C), (0, 0), (0, 0)))
        return jnp.transpose(wp, (0, 2, 3, 1)).reshape(Cp, 9 * Cp).astype(
            jnp.bfloat16)                               # bf16 MXU operands

    w1m, w2m = _wslab(w1), _wslab(w2)

    kernel = functools.partial(_resblock_kernel, C=Cp, H=H, W=W, NB=nb,
                               lacc=lacc)
    const = lambda n: (0, 0)
    grid_spec = pltpu.PrefetchScalarGridSpec(
        num_scalar_prefetch=0,
        grid=(N // nb,),
        in_specs=[
            pl.BlockSpec((nb, Cp, lsrc), lambda n: (n, 0, 0)),     # x slab
            pl.BlockSpec((3, lacc), const),                        # masks
            pl.BlockSpec((Cp, 9 * Cp), const),                     # w1 (bf16)
            pl.BlockSpec((Cp, 9 * Cp), const),                     # w2 (bf16)
        ],
        out_specs=pl.BlockSpec((nb, Cp, lacc), lambda n: (n, 0, 0)),
        scratch_shapes=[
            pltpu.VMEM((nb, Cp, lsrc), jnp.float32),    # padded intermediate
            pltpu.VMEM((9 * Cp, nb * lacc), jnp.float32),  # stacked conv RHS
        ],
    )
    yflat = pl.pallas_call(
        kernel,
        grid_spec=grid_spec,
        out_shape=jax.ShapeDtypeStruct((N, Cp, lacc), jnp.float32),
        compiler_params=pltpu.CompilerParams(
            dimension_semantics=("parallel",)),
    )(xm, masks, w1m, w2m)

    # un-flatten: keep the real channels and the interior of the padded plane
    y = yflat[:, :C, :P].reshape(N, C, Hp, Wp)[:, :, 1:H + 1, 1:W + 1]
    return y


def residual_block_reference(x, w1, b1, w2, b2, conv_dtype=None):
    """Pure-JAX reference matching the PyTorch module semantics.

    conv_dtype=jnp.bfloat16 quantizes the conv operands exactly like the
    kernel's bf16 MXU path (f32 accumulation), isolating quantization error
    from kernel bugs.
    """
    def conv(z, w, b):
        zp = jnp.pad(z, ((0, 0), (0, 0), (1, 1), (1, 1)), mode="reflect")
        prec = lax.Precision.HIGHEST if conv_dtype is None else None
        if conv_dtype is not None:
            zp, w = zp.astype(conv_dtype), w.astype(conv_dtype)
        o = lax.conv_general_dilated(
            zp, w, (1, 1), "VALID",
            dimension_numbers=("NCHW", "OIHW", "NCHW"),
            preferred_element_type=jnp.float32, precision=prec)
        return o.astype(jnp.float32) + b[None, :, None, None]

    def inorm(z):
        m = jnp.mean(z, axis=(2, 3), keepdims=True)
        v = jnp.mean((z - m) ** 2, axis=(2, 3), keepdims=True)
        return (z - m) / jnp.sqrt(v + _EPS)

    h = jax.nn.relu(inorm(conv(x, w1, b1)))
    return x + inorm(conv(h, w2, b2))


if __name__ == "__main__":
    N, C, H, W = 2, 4, 16, 16
    key = jax.random.PRNGKey(0)
    kx, k1, k2, k3, k4 = jax.random.split(key, 5)

    x = jax.random.normal(kx, (N, C, H, W), dtype=jnp.float32)
    fan_in = C * 3 * 3
    bound = 1.0 / (fan_in ** 0.5)  # same scale as PyTorch Conv2d default init
    w1 = jax.random.uniform(k1, (C, C, 3, 3), jnp.float32, -bound, bound)
    b1 = jax.random.uniform(k2, (C,), jnp.float32, -bound, bound)
    w2 = jax.random.uniform(k3, (C, C, 3, 3), jnp.float32, -bound, bound)
    b2 = jax.random.uniform(k4, (C,), jnp.float32, -bound, bound)

    # default batch blocking (-> nb=1 here, grid=(2,), feeds both v7x cores)
    y1 = jax.block_until_ready(jax.jit(residual_block)(x, w1, b1, w2, b2))
    # explicit 2-samples-per-step path (wide-N fused MXU dot)
    y2 = jax.block_until_ready(
        jax.jit(functools.partial(residual_block, batch_block=2))(
            x, w1, b1, w2, b2))

    y_ref_f32 = residual_block_reference(x, w1, b1, w2, b2)
    y_ref_bf16 = residual_block_reference(x, w1, b1, w2, b2,
                                          conv_dtype=jnp.bfloat16)

    assert y1.shape == (N, C, H, W) and y2.shape == (N, C, H, W)
    # Tight check against the bf16-conv reference (same quantization points as
    # the kernel's MXU path) -> validates the kernel itself.
    assert bool(jnp.allclose(y1, y_ref_bf16, atol=2e-3, rtol=2e-3)), \
        "mismatch vs bf16 reference (nb=1)"
    assert bool(jnp.allclose(y2, y_ref_bf16, atol=2e-3, rtol=2e-3)), \
        "mismatch vs bf16 reference (nb=2)"
    # Loose check against the exact f32 module semantics (difference is pure
    # bf16 MXU quantization of the two convolutions).
    assert bool(jnp.allclose(y1, y_ref_f32, atol=3e-2, rtol=3e-2)), \
        "mismatch vs f32 reference (nb=1)"
    assert bool(jnp.allclose(y2, y_ref_f32, atol=3e-2, rtol=3e-2)), \
        "mismatch vs f32 reference (nb=2)"
    print("KERNEL_OK")
</pallas_src>

<mosaic_0001>
module attributes {stable_mosaic.version = 11 : i64} {
  func.func @_resblock_kernel(%arg0: i32, %arg1: memref<1x8x640xf32, #tpu.memory_space<vmem>>, %arg2: memref<3x384xf32, #tpu.memory_space<vmem>>, %arg3: memref<8x72xbf16, #tpu.memory_space<vmem>>, %arg4: memref<8x72xbf16, #tpu.memory_space<vmem>>, %arg5: memref<1x8x384xf32, #tpu.memory_space<vmem>>, %arg6: memref<1x8x640xf32, #tpu.memory_space<vmem>>, %arg7: memref<72x384xf32, #tpu.memory_space<vmem>>) attributes {dimension_semantics = [#tpu.dimension_semantics<parallel>], iteration_bounds = array<i64: 2>, scalar_prefetch = 0 : i64, scratch_operands = 2 : i64, tpu.core_type = #tpu.core_type<tc>, window_params = [{transform_indices = @transform_0, window_bounds = array<i64: 1, 8, 640>}, {pipeline_mode = #tpu.pipeline_mode<synchronous>, transform_indices = @transform_1, window_bounds = array<i64: 3, 384>}, {pipeline_mode = #tpu.pipeline_mode<synchronous>, transform_indices = @transform_2, window_bounds = array<i64: 8, 72>}, {pipeline_mode = #tpu.pipeline_mode<synchronous>, transform_indices = @transform_3, window_bounds = array<i64: 8, 72>}, {transform_indices = @transform_4, window_bounds = array<i64: 1, 8, 384>}]} {
    %c0 = arith.constant 0 : index
    %c0_0 = arith.constant 0 : index
    %0 = vector.load %arg2[%c0, %c0_0] : memref<3x384xf32, #tpu.memory_space<vmem>>, vector<1x384xf32>
    %cst = arith.constant 5.000000e-01 : f32
    %1 = vector.broadcast %cst : f32 to vector<1x384xf32>
    %2 = arith.cmpf ogt, %0, %1 : vector<1x384xf32>
    %c1 = arith.constant 1 : index
    %c0_1 = arith.constant 0 : index
    %3 = vector.load %arg2[%c1, %c0_1] : memref<3x384xf32, #tpu.memory_space<vmem>>, vector<1x384xf32>
    %cst_2 = arith.constant 5.000000e-01 : f32
    %4 = vector.broadcast %cst_2 : f32 to vector<1x384xf32>
    %5 = arith.cmpf ogt, %3, %4 : vector<1x384xf32>
    %c2 = arith.constant 2 : index
    %c0_3 = arith.constant 0 : index
    %6 = vector.load %arg2[%c2, %c0_3] : memref<3x384xf32, #tpu.memory_space<vmem>>, vector<1x384xf32>
    %cst_4 = arith.constant 5.000000e-01 : f32
    %7 = vector.broadcast %cst_4 : f32 to vector<1x384xf32>
    %8 = arith.cmpf ogt, %6, %7 : vector<1x384xf32>
    %cst_5 = arith.constant 0.000000e+00 : f32
    %9 = vector.broadcast %cst_5 : f32 to vector<1x8x128xf32>
    %c0_6 = arith.constant 0 : index
    %c0_7 = arith.constant 0 : index
    %c0_8 = arith.constant 0 : index
    %10 = vector.load %arg6[%c0_6, %c0_7, %c0_8] : memref<1x8x640xf32, #tpu.memory_space<vmem>>, vector<1x8x128xf32>
    tpu.vector_store %arg6[%c0_6, %c0_7, %c0_8], %9 {strides = array<i32>} : memref<1x8x640xf32, #tpu.memory_space<vmem>>, vector<1x8x128xf32>,
    %cst_9 = arith.constant 0.000000e+00 : f32
    %11 = vector.broadcast %cst_9 : f32 to vector<1x8x128xf32>
    %c0_10 = arith.constant 0 : index
    %c0_11 = arith.constant 0 : index
    %c512 = arith.constant 512 : index
    %12 = vector.load %arg6[%c0_10, %c0_11, %c512] : memref<1x8x640xf32, #tpu.memory_space<vmem>>, vector<1x8x128xf32>
    tpu.vector_store %arg6[%c0_10, %c0_11, %c512], %11 {strides = array<i32>} : memref<1x8x640xf32, #tpu.memory_space<vmem>>, vector<1x8x128xf32>,
    %c0_12 = arith.constant 0 : index
    %c0_13 = arith.constant 0 : index
    %c109 = arith.constant 109 : index
    %13 = vector.load %arg1[%c0_12, %c0_13, %c109] : memref<1x8x640xf32, #tpu.memory_space<vmem>>, vector<1x8x384xf32>
    %14 = vector.shape_cast %13 : vector<1x8x384xf32> to vector<8x384xf32>
    %c0_14 = arith.constant 0 : index
    %c0_15 = arith.constant 0 : index
    %15 = vector.load %arg7[%c0_14, %c0_15] : memref<72x384xf32, #tpu.memory_space<vmem>>, vector<8x384xf32>
    tpu.vector_store %arg7[%c0_14, %c0_15], %14 {strides = array<i32>} : memref<72x384xf32, #tpu.memory_space<vmem>>, vector<8x384xf32>,
    %c0_16 = arith.constant 0 : index
    %c0_17 = arith.constant 0 : index
    %c110 = arith.constant 110 : index
    %16 = vector.load %arg1[%c0_16, %c0_17, %c110] : memref<1x8x640xf32, #tpu.memory_space<vmem>>, vector<1x8x384xf32>
    %17 = vector.shape_cast %16 : vector<1x8x384xf32> to vector<8x384xf32>
    %c8 = arith.constant 8 : index
    %c0_18 = arith.constant 0 : index
    %18 = vector.load %arg7[%c8, %c0_18] : memref<72x384xf32, #tpu.memory_space<vmem>>, vector<8x384xf32>
    tpu.vector_store %arg7[%c8, %c0_18], %17 {strides = array<i32>} : memref<72x384xf32, #tpu.memory_space<vmem>>, vector<8x384xf32>,
    %c0_19 = arith.constant 0 : index
    %c0_20 = arith.constant 0 : index
    %c111 = arith.constant 111 : index
    %19 = vector.load %arg1[%c0_19, %c0_20, %c111] : memref<1x8x640xf32, #tpu.memory_space<vmem>>, vector<1x8x384xf32>
    %20 = vector.shape_cast %19 : vector<1x8x384xf32> to vector<8x384xf32>
    %c16 = arith.constant 16 : index
    %c0_21 = arith.constant 0 : index
    %21 = vector.load %arg7[%c16, %c0_21] : memref<72x384xf32, #tpu.memory_space<vmem>>, vector<8x384xf32>
    tpu.vector_store %arg7[%c16, %c0_21], %20 {strides = array<i32>} : memref<72x384xf32, #tpu.memory_space<vmem>>, vector<8x384xf32>,
    %c0_22 = arith.constant 0 : index
    %c0_23 = arith.constant 0 : index
    %c127 = arith.constant 127 : index
    %22 = vector.load %arg1[%c0_22, %c0_23, %c127] : memref<1x8x640xf32, #tpu.memory_space<vmem>>, vector<1x8x384xf32>
    %23 = vector.shape_cast %22 : vector<1x8x384xf32> to vector<8x384xf32>
    %c24 = arith.constant 24 : index
    %c0_24 = arith.constant 0 : index
    %24 = vector.load %arg7[%c24, %c0_24] : memref<72x384xf32, #tpu.memory_space<vmem>>, vector<8x384xf32>
    tpu.vector_store %arg7[%c24, %c0_24], %23 {strides = array<i32>} : memref<72x384xf32, #tpu.memory_space<vmem>>, vector<8x384xf32>,
    %c0_25 = arith.constant 0 : index
    %c0_26 = arith.constant 0 : index
    %c128 = arith.constant 128 : index
    %25 = vector.load %arg1[%c0_25, %c0_26, %c128] : memref<1x8x640xf32, #tpu.memory_space<vmem>>, vector<1x8x384xf32>
    %26 = vector.shape_cast %25 : vector<1x8x384xf32> to vector<8x384xf32>
    %c32 = arith.constant 32 : index
    %c0_27 = arith.constant 0 : index
    %27 = vector.load %arg7[%c32, %c0_27] : memref<72x384xf32, #tpu.memory_space<vmem>>, vector<8x384xf32>
    tpu.vector_store %arg7[%c32, %c0_27], %26 {strides = array<i32>} : memref<72x384xf32, #tpu.memory_space<vmem>>, vector<8x384xf32>,
    %c0_28 = arith.constant 0 : index
    %c0_29 = arith.constant 0 : index
    %c129 = arith.constant 129 : index
    %28 = vector.load %arg1[%c0_28, %c0_29, %c129] : memref<1x8x640xf32, #tpu.memory_space<vmem>>, vector<1x8x384xf32>
    %29 = vector.shape_cast %28 : vector<1x8x384xf32> to vector<8x384xf32>
    %c40 = arith.constant 40 : index
    %c0_30 = arith.constant 0 : index
    %30 = vector.load %arg7[%c40, %c0_30] : memref<72x384xf32, #tpu.memory_space<vmem>>, vector<8x384xf32>
    tpu.vector_store %arg7[%c40, %c0_30], %29 {strides = array<i32>} : memref<72x384xf32, #tpu.memory_space<vmem>>, vector<8x384xf32>,
    %c0_31 = arith.constant 0 : index
    %c0_32 = arith.constant 0 : index
    %c145 = arith.constant 145 : index
    %31 = vector.load %arg1[%c0_31, %c0_32, %c145] : memref<1x8x640xf32, #tpu.memory_space<vmem>>, vector<1x8x384xf32>
    %32 = vector.shape_cast %31 : vector<1x8x384xf32> to vector<8x384xf32>
    %c48 = arith.constant 48 : index
    %c0_33 = arith.constant 0 : index
    %33 = vector.load %arg7[%c48, %c0_33] : memref<72x384xf32, #tpu.memory_space<vmem>>, vector<8x384xf32>
    tpu.vector_store %arg7[%c48, %c0_33], %32 {strides = array<i32>} : memref<72x384xf32, #tpu.memory_space<vmem>>, vector<8x384xf32>,
    %c0_34 = arith.constant 0 : index
    %c0_35 = arith.constant 0 : index
    %c146 = arith.constant 146 : index
    %34 = vector.load %arg1[%c0_34, %c0_35, %c146] : memref<1x8x640xf32, #tpu.memory_space<vmem>>, vector<1x8x384xf32>
    %35 = vector.shape_cast %34 : vector<1x8x384xf32> to vector<8x384xf32>
    %c56 = arith.constant 56 : index
    %c0_36 = arith.constant 0 : index
    %36 = vector.load %arg7[%c56, %c0_36] : memref<72x384xf32, #tpu.memory_space<vmem>>, vector<8x384xf32>
    tpu.vector_store %arg7[%c56, %c0_36], %35 {strides = array<i32>} : memref<72x384xf32, #tpu.memory_space<vmem>>, vector<8x384xf32>,
    %c0_37 = arith.constant 0 : index
    %c0_38 = arith.constant 0 : index
    %c147 = arith.constant 147 : index
    %37 = vector.load %arg1[%c0_37, %c0_38, %c147] : memref<1x8x640xf32, #tpu.memory_space<vmem>>, vector<1x8x384xf32>
    %38 = vector.shape_cast %37 : vector<1x8x384xf32> to vector<8x384xf32>
    %c64 = arith.constant 64 : index
    %c0_39 = arith.constant 0 : index
    %39 = vector.load %arg7[%c64, %c0_39] : memref<72x384xf32, #tpu.memory_space<vmem>>, vector<8x384xf32>
    tpu.vector_store %arg7[%c64, %c0_39], %38 {strides = array<i32>} : memref<72x384xf32, #tpu.memory_space<vmem>>, vector<8x384xf32>,
    %c0_40 = arith.constant 0 : index
    %c0_41 = arith.constant 0 : index
    %40 = vector.load %arg3[%c0_40, %c0_41] : memref<8x72xbf16, #tpu.memory_space<vmem>>, vector<8x72xbf16>
    %c0_42 = arith.constant 0 : index
    %c0_43 = arith.constant 0 : index
    %41 = vector.load %arg7[%c0_42, %c0_43] : memref<72x384xf32, #tpu.memory_space<vmem>>, vector<72x384xf32>
    %42 = arith.truncf %41 : vector<72x384xf32> to vector<72x384xbf16>
    %cst_44 = arith.constant dense<0.000000e+00> : vector<8x384xf32>
    %43 = tpu.matmul %40, %42, %cst_44 {dimension_numbers = #tpu.dot_dimension_numbers<[1], [0], [0], [1], [0, 0, 1, 1], [], []>} : vector<8x72xbf16>, vector<72x384xbf16>, vector<8x384xf32> -> vector<8x384xf32>
    %cst_45 = arith.constant 0.000000e+00 : f32
    %44 = vector.shape_cast %2 : vector<1x384xi1> to vector<1x384xi1>
    %45 = vector.broadcast %44 : vector<1x384xi1> to vector<8x384xi1>
    %46 = vector.broadcast %cst_45 : f32 to vector<8x384xf32>
    %47 = arith.select %45, %43, %46 : vector<8x384xi1>, vector<8x384xf32>
    %cst_46 = arith.constant dense<0.000000e+00> : vector<8xf32>
    %48 = vector.multi_reduction <add>, %47, %cst_46 [1] : vector<8x384xf32> to vector<8xf32>
    %49 = vector.shape_cast %48 : vector<8xf32> to vector<8x1xf32>
    %50 = arith.mulf %47, %47 : vector<8x384xf32>
    %cst_47 = arith.constant dense<0.000000e+00> : vector<8xf32>
    %51 = vector.multi_reduction <add>, %50, %cst_47 [1] : vector<8x384xf32> to vector<8xf32>
    %52 = vector.shape_cast %51 : vector<8xf32> to vector<8x1xf32>
    %cst_48 = arith.constant 3.906250e-03 : f32
    %53 = vector.broadcast %cst_48 : f32 to vector<8x1xf32>
    %54 = arith.mulf %49, %53 : vector<8x1xf32>
    %cst_49 = arith.constant 3.906250e-03 : f32
    %55 = vector.broadcast %cst_49 : f32 to vector<8x1xf32>
    %56 = arith.mulf %52, %55 : vector<8x1xf32>
    %57 = arith.mulf %54, %54 : vector<8x1xf32>
    %58 = arith.subf %56, %57 : vector<8x1xf32>
    %cst_50 = arith.constant 0.000000e+00 : f32
    %59 = vector.broadcast %cst_50 : f32 to vector<8x1xf32>
    %60 = arith.maximumf %58, %59 : vector<8x1xf32>
    %61 = vector.broadcast %54 : vector<8x1xf32> to vector<8x384xf32>
    %62 = arith.subf %43, %61 : vector<8x384xf32>
    %cst_51 = arith.constant 9.99999974E-6 : f32
    %63 = vector.broadcast %cst_51 : f32 to vector<8x1xf32>
    %64 = arith.addf %60, %63 : vector<8x1xf32>
    %65 = math.rsqrt %64 : vector<8x1xf32>
    %66 = vector.broadcast %65 : vector<8x1xf32> to vector<8x384xf32>
    %67 = arith.mulf %62, %66 : vector<8x384xf32>
    %cst_52 = arith.constant 0.000000e+00 : f32
    %68 = vector.broadcast %cst_52 : f32 to vector<8x384xf32>
    %69 = arith.maximumf %67, %68 : vector<8x384xf32>
    %c0_53 = arith.constant 0 : index
    %c0_54 = arith.constant 0 : index
    %c128_55 = arith.constant 128 : index
    %70 = vector.load %arg6[%c0_53, %c0_54, %c128_55] : memref<1x8x640xf32, #tpu.memory_space<vmem>>, vector<1x8x384xf32>
    %71 = vector.shape_cast %70 : vector<1x8x384xf32> to vector<8x384xf32>
    %72 = vector.shape_cast %69 : vector<8x384xf32> to vector<1x8x384xf32>
    tpu.vector_store %arg6[%c0_53, %c0_54, %c128_55], %72 {strides = array<i32>} : memref<1x8x640xf32, #tpu.memory_space<vmem>>, vector<1x8x384xf32>,
    %c0_56 = arith.constant 0 : index
    %c0_57 = arith.constant 0 : index
    %c164 = arith.constant 164 : index
    %73 = vector.load %arg6[%c0_56, %c0_57, %c164] : memref<1x8x640xf32, #tpu.memory_space<vmem>>, vector<1x8x18xf32>
    %74 = vector.shape_cast %73 : vector<1x8x18xf32> to vector<8x18xf32>
    %c0_58 = arith.constant 0 : index
    %c0_59 = arith.constant 0 : index
    %c128_60 = arith.constant 128 : index
    %75 = vector.load %arg6[%c0_58, %c0_59, %c128_60] : memref<1x8x640xf32, #tpu.memory_space<vmem>>, vector<1x8x18xf32>
    %76 = vector.shape_cast %75 : vector<1x8x18xf32> to vector<8x18xf32>
    %77 = vector.shape_cast %74 : vector<8x18xf32> to vector<1x8x18xf32>
    tpu.vector_store %arg6[%c0_58, %c0_59, %c128_60], %77 {strides = array<i32>} : memref<1x8x640xf32, #tpu.memory_space<vmem>>, vector<1x8x18xf32>,
    %c0_61 = arith.constant 0 : index
    %c0_62 = arith.constant 0 : index
    %c398 = arith.constant 398 : index
    %78 = vector.load %arg6[%c0_61, %c0_62, %c398] : memref<1x8x640xf32, #tpu.memory_space<vmem>>, vector<1x8x18xf32>
    %79 = vector.shape_cast %78 : vector<1x8x18xf32> to vector<8x18xf32>
    %c0_63 = arith.constant 0 : index
    %c0_64 = arith.constant 0 : index
    %c434 = arith.constant 434 : index
    %80 = vector.load %arg6[%c0_63, %c0_64, %c434] : memref<1x8x640xf32, #tpu.memory_space<vmem>>, vector<1x8x18xf32>
    %81 = vector.shape_cast %80 : vector<1x8x18xf32> to vector<8x18xf32>
    %82 = vector.shape_cast %79 : vector<8x18xf32> to vector<1x8x18xf32>
    tpu.vector_store %arg6[%c0_63, %c0_64, %c434], %82 {strides = array<i32>} : memref<1x8x640xf32, #tpu.memory_space<vmem>>, vector<1x8x18xf32>,
    %c0_65 = arith.constant 0 : index
    %c0_66 = arith.constant 0 : index
    %c128_67 = arith.constant 128 : index
    %83 = vector.load %arg6[%c0_65, %c0_66, %c128_67] : memref<1x8x640xf32, #tpu.memory_space<vmem>>, vector<1x8x384xf32>
    %84 = vector.shape_cast %83 : vector<1x8x384xf32> to vector<8x384xf32>
    %c0_68 = arith.constant 0 : index
    %c0_69 = arith.constant 0 : index
    %c130 = arith.constant 130 : index
    %85 = vector.load %arg6[%c0_68, %c0_69, %c130] : memref<1x8x640xf32, #tpu.memory_space<vmem>>, vector<1x8x384xf32>
    %86 = vector.shape_cast %85 : vector<1x8x384xf32> to vector<8x384xf32>
    %c0_70 = arith.constant 0 : index
    %c0_71 = arith.constant 0 : index
    %c126 = arith.constant 126 : index
    %87 = vector.load %arg6[%c0_70, %c0_71, %c126] : memref<1x8x640xf32, #tpu.memory_space<vmem>>, vector<1x8x384xf32>
    %88 = vector.shape_cast %87 : vector<1x8x384xf32> to vector<8x384xf32>
    %89 = vector.shape_cast %5 : vector<1x384xi1> to vector<1x384xi1>
    %90 = vector.broadcast %89 : vector<1x384xi1> to vector<8x384xi1>
    %91 = arith.select %90, %86, %84 : vector<8x384xi1>, vector<8x384xf32>
    %92 = vector.shape_cast %8 : vector<1x384xi1> to vector<1x384xi1>
    %93 = vector.broadcast %92 : vector<1x384xi1> to vector<8x384xi1>
    %94 = arith.select %93, %88, %91 : vector<8x384xi1>, vector<8x384xf32>
    %c0_72 = arith.constant 0 : index
    %c0_73 = arith.constant 0 : index
    %c128_74 = arith.constant 128 : index
    %95 = vector.load %arg6[%c0_72, %c0_73, %c128_74] : memref<1x8x640xf32, #tpu.memory_space<vmem>>, vector<1x8x384xf32>
    %96 = vector.shape_cast %95 : vector<1x8x384xf32> to vector<8x384xf32>
    %97 = vector.shape_cast %94 : vector<8x384xf32> to vector<1x8x384xf32>
    tpu.vector_store %arg6[%c0_72, %c0_73, %c128_74], %97 {strides = array<i32>} : memref<1x8x640xf32, #tpu.memory_space<vmem>>, vector<1x8x384xf32>,
    %c0_75 = arith.constant 0 : index
    %c0_76 = arith.constant 0 : index
    %c109_77 = arith.constant 109 : index
    %98 = vector.load %arg6[%c0_75, %c0_76, %c109_77] : memref<1x8x640xf32, #tpu.memory_space<vmem>>, vector<1x8x384xf32>
    %99 = vector.shape_cast %98 : vector<1x8x384xf32> to vector<8x384xf32>
    %c0_78 = arith.constant 0 : index
    %c0_79 = arith.constant 0 : index
    %100 = vector.load %arg7[%c0_78, %c0_79] : memref<72x384xf32, #tpu.memory_space<vmem>>, vector<8x384xf32>
    tpu.vector_store %arg7[%c0_78, %c0_79], %99 {strides = array<i32>} : memref<72x384xf32, #tpu.memory_space<vmem>>, vector<8x384xf32>,
    %c0_80 = arith.constant 0 : index
    %c0_81 = arith.constant 0 : index
    %c110_82 = arith.constant 110 : index
    %101 = vector.load %arg6[%c0_80, %c0_81, %c110_82] : memref<1x8x640xf32, #tpu.memory_space<vmem>>, vector<1x8x384xf32>
    %102 = vector.shape_cast %101 : vector<1x8x384xf32> to vector<8x384xf32>
    %c8_83 = arith.constant 8 : index
    %c0_84 = arith.constant 0 : index
    %103 = vector.load %arg7[%c8_83, %c0_84] : memref<72x384xf32, #tpu.memory_space<vmem>>, vector<8x384xf32>
    tpu.vector_store %arg7[%c8_83, %c0_84], %102 {strides = array<i32>} : memref<72x384xf32, #tpu.memory_space<vmem>>, vector<8x384xf32>,
    %c0_85 = arith.constant 0 : index
    %c0_86 = arith.constant 0 : index
    %c111_87 = arith.constant 111 : index
    %104 = vector.load %arg6[%c0_85, %c0_86, %c111_87] : memref<1x8x640xf32, #tpu.memory_space<vmem>>, vector<1x8x384xf32>
    %105 = vector.shape_cast %104 : vector<1x8x384xf32> to vector<8x384xf32>
    %c16_88 = arith.constant 16 : index
    %c0_89 = arith.constant 0 : index
    %106 = vector.load %arg7[%c16_88, %c0_89] : memref<72x384xf32, #tpu.memory_space<vmem>>, vector<8x384xf32>
    tpu.vector_store %arg7[%c16_88, %c0_89], %105 {strides = array<i32>} : memref<72x384xf32, #tpu.memory_space<vmem>>, vector<8x384xf32>,
    %c0_90 = arith.constant 0 : index
    %c0_91 = arith.constant 0 : index
    %c127_92 = arith.constant 127 : index
    %107 = vector.load %arg6[%c0_90, %c0_91, %c127_92] : memref<1x8x640xf32, #tpu.memory_space<vmem>>, vector<1x8x384xf32>
    %108 = vector.shape_cast %107 : vector<1x8x384xf32> to vector<8x384xf32>
    %c24_93 = arith.constant 24 : index
    %c0_94 = arith.constant 0 : index
    %109 = vector.load %arg7[%c24_93, %c0_94] : memref<72x384xf32, #tpu.memory_space<vmem>>, vector<8x384xf32>
    tpu.vector_store %arg7[%c24_93, %c0_94], %108 {strides = array<i32>} : memref<72x384xf32, #tpu.memory_space<vmem>>, vector<8x384xf32>,
    %c0_95 = arith.constant 0 : index
    %c0_96 = arith.constant 0 : index
    %c128_97 = arith.constant 128 : index
    %110 = vector.load %arg6[%c0_95, %c0_96, %c128_97] : memref<1x8x640xf32, #tpu.memory_space<vmem>>, vector<1x8x384xf32>
    %111 = vector.shape_cast %110 : vector<1x8x384xf32> to vector<8x384xf32>
    %c32_98 = arith.constant 32 : index
    %c0_99 = arith.constant 0 : index
    %112 = vector.load %arg7[%c32_98, %c0_99] : memref<72x384xf32, #tpu.memory_space<vmem>>, vector<8x384xf32>
    tpu.vector_store %arg7[%c32_98, %c0_99], %111 {strides = array<i32>} : memref<72x384xf32, #tpu.memory_space<vmem>>, vector<8x384xf32>,
    %c0_100 = arith.constant 0 : index
    %c0_101 = arith.constant 0 : index
    %c129_102 = arith.constant 129 : index
    %113 = vector.load %arg6[%c0_100, %c0_101, %c129_102] : memref<1x8x640xf32, #tpu.memory_space<vmem>>, vector<1x8x384xf32>
    %114 = vector.shape_cast %113 : vector<1x8x384xf32> to vector<8x384xf32>
    %c40_103 = arith.constant 40 : index
    %c0_104 = arith.constant 0 : index
    %115 = vector.load %arg7[%c40_103, %c0_104] : memref<72x384xf32, #tpu.memory_space<vmem>>, vector<8x384xf32>
    tpu.vector_store %arg7[%c40_103, %c0_104], %114 {strides = array<i32>} : memref<72x384xf32, #tpu.memory_space<vmem>>, vector<8x384xf32>,
    %c0_105 = arith.constant 0 : index
    %c0_106 = arith.constant 0 : index
    %c145_107 = arith.constant 145 : index
    %116 = vector.load %arg6[%c0_105, %c0_106, %c145_107] : memref<1x8x640xf32, #tpu.memory_space<vmem>>, vector<1x8x384xf32>
    %117 = vector.shape_cast %116 : vector<1x8x384xf32> to vector<8x384xf32>
    %c48_108 = arith.constant 48 : index
    %c0_109 = arith.constant 0 : index
    %118 = vector.load %arg7[%c48_108, %c0_109] : memref<72x384xf32, #tpu.memory_space<vmem>>, vector<8x384xf32>
    tpu.vector_store %arg7[%c48_108, %c0_109], %117 {strides = array<i32>} : memref<72x384xf32, #tpu.memory_space<vmem>>, vector<8x384xf32>,
    %c0_110 = arith.constant 0 : index
    %c0_111 = arith.constant 0 : index
    %c146_112 = arith.constant 146 : index
    %119 = vector.load %arg6[%c0_110, %c0_111, %c146_112] : memref<1x8x640xf32, #tpu.memory_space<vmem>>, vector<1x8x384xf32>
    %120 = vector.shape_cast %119 : vector<1x8x384xf32> to vector<8x384xf32>
    %c56_113 = arith.constant 56 : index
    %c0_114 = arith.constant 0 : index
    %121 = vector.load %arg7[%c56_113, %c0_114] : memref<72x384xf32, #tpu.memory_space<vmem>>, vector<8x384xf32>
    tpu.vector_store %arg7[%c56_113, %c0_114], %120 {strides = array<i32>} : memref<72x384xf32, #tpu.memory_space<vmem>>, vector<8x384xf32>,
    %c0_115 = arith.constant 0 : index
    %c0_116 = arith.constant 0 : index
    %c147_117 = arith.constant 147 : index
    %122 = vector.load %arg6[%c0_115, %c0_116, %c147_117] : memref<1x8x640xf32, #tpu.memory_space<vmem>>, vector<1x8x384xf32>
    %123 = vector.shape_cast %122 : vector<1x8x384xf32> to vector<8x384xf32>
    %c64_118 = arith.constant 64 : index
    %c0_119 = arith.constant 0 : index
    %124 = vector.load %arg7[%c64_118, %c0_119] : memref<72x384xf32, #tpu.memory_space<vmem>>, vector<8x384xf32>
    tpu.vector_store %arg7[%c64_118, %c0_119], %123 {strides = array<i32>} : memref<72x384xf32, #tpu.memory_space<vmem>>, vector<8x384xf32>,
    %c0_120 = arith.constant 0 : index
    %c0_121 = arith.constant 0 : index
    %125 = vector.load %arg4[%c0_120, %c0_121] : memref<8x72xbf16, #tpu.memory_space<vmem>>, vector<8x72xbf16>
    %c0_122 = arith.constant 0 : index
    %c0_123 = arith.constant 0 : index
    %126 = vector.load %arg7[%c0_122, %c0_123] : memref<72x384xf32, #tpu.memory_space<vmem>>, vector<72x384xf32>
    %127 = arith.truncf %126 : vector<72x384xf32> to vector<72x384xbf16>
    %cst_124 = arith.constant dense<0.000000e+00> : vector<8x384xf32>
    %128 = tpu.matmul %125, %127, %cst_124 {dimension_numbers = #tpu.dot_dimension_numbers<[1], [0], [0], [1], [0, 0, 1, 1], [], []>} : vector<8x72xbf16>, vector<72x384xbf16>, vector<8x384xf32> -> vector<8x384xf32>
    %cst_125 = arith.constant 0.000000e+00 : f32
    %129 = vector.shape_cast %2 : vector<1x384xi1> to vector<1x384xi1>
    %130 = vector.broadcast %129 : vector<1x384xi1> to vector<8x384xi1>
    %131 = vector.broadcast %cst_125 : f32 to vector<8x384xf32>
    %132 = arith.select %130, %128, %131 : vector<8x384xi1>, vector<8x384xf32>
    %cst_126 = arith.constant dense<0.000000e+00> : vector<8xf32>
    %133 = vector.multi_reduction <add>, %132, %cst_126 [1] : vector<8x384xf32> to vector<8xf32>
    %134 = vector.shape_cast %133 : vector<8xf32> to vector<8x1xf32>
    %135 = arith.mulf %132, %132 : vector<8x384xf32>
    %cst_127 = arith.constant dense<0.000000e+00> : vector<8xf32>
    %136 = vector.multi_reduction <add>, %135, %cst_127 [1] : vector<8x384xf32> to vector<8xf32>
    %137 = vector.shape_cast %136 : vector<8xf32> to vector<8x1xf32>
    %cst_128 = arith.constant 3.906250e-03 : f32
    %138 = vector.broadcast %cst_128 : f32 to vector<8x1xf32>
    %139 = arith.mulf %134, %138 : vector<8x1xf32>
    %cst_129 = arith.constant 3.906250e-03 : f32
    %140 = vector.broadcast %cst_129 : f32 to vector<8x1xf32>
    %141 = arith.mulf %137, %140 : vector<8x1xf32>
    %142 = arith.mulf %139, %139 : vector<8x1xf32>
    %143 = arith.subf %141, %142 : vector<8x1xf32>
    %cst_130 = arith.constant 0.000000e+00 : f32
    %144 = vector.broadcast %cst_130 : f32 to vector<8x1xf32>
    %145 = arith.maximumf %143, %144 : vector<8x1xf32>
    %146 = vector.broadcast %139 : vector<8x1xf32> to vector<8x384xf32>
    %147 = arith.subf %128, %146 : vector<8x384xf32>
    %cst_131 = arith.constant 9.99999974E-6 : f32
    %148 = vector.broadcast %cst_131 : f32 to vector<8x1xf32>
    %149 = arith.addf %145, %148 : vector<8x1xf32>
    %150 = math.rsqrt %149 : vector<8x1xf32>
    %151 = vector.broadcast %150 : vector<8x1xf32> to vector<8x384xf32>
    %152 = arith.mulf %147, %151 : vector<8x384xf32>
    %c0_132 = arith.constant 0 : index
    %c0_133 = arith.constant 0 : index
    %c128_134 = arith.constant 128 : index
    %153 = vector.load %arg1[%c0_132, %c0_133, %c128_134] : memref<1x8x640xf32, #tpu.memory_space<vmem>>, vector<1x8x384xf32>
    %154 = vector.shape_cast %153 : vector<1x8x384xf32> to vector<8x384xf32>
    %155 = arith.addf %154, %152 : vector<8x384xf32>
    %c0_135 = arith.constant 0 : index
    %c0_136 = arith.constant 0 : index
    %c0_137 = arith.constant 0 : index
    %156 = vector.load %arg5[%c0_135, %c0_136, %c0_137] : memref<1x8x384xf32, #tpu.memory_space<vmem>>, vector<1x8x384xf32>
    %157 = vector.shape_cast %156 : vector<1x8x384xf32> to vector<8x384xf32>
    %158 = vector.shape_cast %155 : vector<8x384xf32> to vector<1x8x384xf32>
    tpu.vector_store %arg5[%c0_135, %c0_136, %c0_137], %158 {strides = array<i32>} : memref<1x8x384xf32, #tpu.memory_space<vmem>>, vector<1x8x384xf32>,
    return
  }
  func.func @transform_0(%arg0: i32) -> (i32, i32, i32) {
    %c0_i32 = arith.constant 0 : i32
    %c0_i32_0 = arith.constant 0 : i32
    %c0_i32_1 = arith.constant 0 : i32
    return %arg0, %c0_i32, %c0_i32_0 : i32, i32, i32
  }
  func.func @transform_1(%arg0: i32) -> (i32, i32) {
    %c0_i32 = arith.constant 0 : i32
    %c0_i32_0 = arith.constant 0 : i32
    %c0_i32_1 = arith.constant 0 : i32
    return %c0_i32, %c0_i32_0 : i32, i32
  }
  func.func @transform_2(%arg0: i32) -> (i32, i32) {
    %c0_i32 = arith.constant 0 : i32
    %c0_i32_0 = arith.constant 0 : i32
    %c0_i32_1 = arith.constant 0 : i32
    return %c0_i32, %c0_i32_0 : i32, i32
  }
  func.func @transform_3(%arg0: i32) -> (i32, i32) {
    %c0_i32 = arith.constant 0 : i32
    %c0_i32_0 = arith.constant 0 : i32
    %c0_i32_1 = arith.constant 0 : i32
    return %c0_i32, %c0_i32_0 : i32, i32
  }
  func.func @transform_4(%arg0: i32) -> (i32, i32, i32) {
    %c0_i32 = arith.constant 0 : i32
    %c0_i32_0 = arith.constant 0 : i32
    %c0_i32_1 = arith.constant 0 : i32
    return %arg0, %c0_i32, %c0_i32_0 : i32, i32, i32
  }
}

</mosaic_0001>

<llo_original>
// kernel: residual_block.1
$region0: #{residual_block.1}
  #allocation0 [shape = 'u32[]', space=smem, size = 0x4, offset = 0x4, fixed_abs, tag = 'smem constant byte address 0x4 - core index']
  #allocation1 [shape = 'u32[144,128]{1,0:T(1,128)}', space=vmem, size = 0x12000, scoped, tag = 'internal scratch']
  #allocation2 [shape = 'f32[1,8,640]{2,1,0:T(8,128)}', space=vmem, size = 0x5000, scoped, tag = 'scratch operand']
  #allocation3 [shape = 'f32[72,384]{1,0:T(8,128)}', space=vmem, size = 0x1b000, scoped, tag = 'scratch operand']
  %s0 = inlined_call_operand.vmem [shape: f32[2,8,640], index: 0, kind: input, shape index: {}]
  %s1 = inlined_call_operand.vmem [shape: f32[3,384], index: 1, kind: input, shape index: {}]
  %s2 = inlined_call_operand.vmem [shape: bf16[8,72], index: 2, kind: input, shape index: {}]
  %s3 = inlined_call_operand.vmem [shape: bf16[8,72], index: 3, kind: input, shape index: {}]
  %s4 = inlined_call_operand.vmem [shape: f32[2,8,384], index: 4, kind: output, shape index: {}]
  %s5 = sld [smem:[#allocation0]]
  $region49: #{residual_block.1} parent=0
    _
  %s7 = ssub.s32 1, %s5
  %s8 = scalar_select 0, %s7, %s5
  loop: start=0, step=1, limit=4
  $region2: #{residual_block.1} parent=0 // loop_pre_header
    _
  $region3: #{residual_block.1} parent=0 // loop_header
    %s10 = sphi 0, %s14
    %p11 = scmp.ge.s32.totalorder %s10, 4
    %s20 = sphi 0, %s22
    %s23 = sphi 0, %s20
    %s24 = sphi 0, %s23
    %s40 = sphi 0, %s24
    %s44 = sphi 0, %s44
    %s46 = sphi 0, %s44
    %s47 = sphi 0, %s46
    %s61 = sphi 0, %s47
    %s65 = sphi 0, %s65
    %s67 = sphi 0, %s65
    %s68 = sphi 0, %s67
    %s82 = sphi 0, %s68
    %s86 = sphi 0, %s86
    %s88 = sphi 0, %s86
    %s89 = sphi 0, %s88
    %s103 = sphi 0, %s89
    %s109 = sphi 0, %s111
    %s112 = sphi 0, %s109
    %s113 = sphi 0, %s112
    %s129 = sphi 0, %s113
  $region4: #{residual_block.1} parent=0 // loop_header_branch
    %13 = sbr.rel (%p11) target = $region8
  $region5: #{residual_block.1} parent=0 // loop_body
    %s15 = ssub.s32 %s10, 1
    %s16 = ssub.s32 %s10, 2
    %s17 = sadd.s32 %s10, 1
    %s18 = ssub.s32 %s10, %s17
    %p19 = scmp.eq.s32.totalorder %s18, 0
    %s21 = sadd.s32 %s20, 1
    %s22 = scalar_select %p19, %s20, %s21
    %p25 = pneg %p19
    %p26 = scmp.eq.s32.totalorder %s10, 1
    %p27 = por %p25, %p26
    %p28 = scmp.ne.s32.totalorder %s20, %s23
    %p29 = scmp.eq.s32.totalorder %s10, 0
    %p30 = por %p28, %p29
    %p31 = scmp.ne.s32.totalorder %s20, %s23
    %p32 = scmp.eq.s32.totalorder %s15, 1
    %p33 = por %p31, %p32
    %p34 = scmp.ne.s32.totalorder %s23, %s24
    %p35 = scmp.eq.s32.totalorder %s15, 0
    %p36 = por %p34, %p35
    %p37 = scmp.ne.s32.totalorder %s23, %s24
    %p38 = scmp.eq.s32.totalorder %s16, 1
    %p39 = por %p37, %p38
    %p41 = scmp.ne.s32.totalorder %s24, %s40
    %p42 = scmp.eq.s32.totalorder %s16, 0
    %p43 = por %p41, %p42
    %s45 = sadd.s32 %s44, 1
    %p48 = scmp.eq.s32.totalorder %s10, 1
    %p49 = scmp.ne.s32.totalorder %s44, %s46
    %p50 = scmp.eq.s32.totalorder %s10, 0
    %p51 = por %p49, %p50
    %p52 = scmp.ne.s32.totalorder %s44, %s46
    %p53 = scmp.eq.s32.totalorder %s15, 1
    %p54 = por %p52, %p53
    %p55 = scmp.ne.s32.totalorder %s46, %s47
    %p56 = scmp.eq.s32.totalorder %s15, 0
    %p57 = por %p55, %p56
    %p58 = scmp.ne.s32.totalorder %s46, %s47
    %p59 = scmp.eq.s32.totalorder %s16, 1
    %p60 = por %p58, %p59
    %p62 = scmp.ne.s32.totalorder %s47, %s61
    %p63 = scmp.eq.s32.totalorder %s16, 0
    %p64 = por %p62, %p63
    %s66 = sadd.s32 %s65, 1
    %p69 = scmp.eq.s32.totalorder %s10, 1
    %p70 = scmp.ne.s32.totalorder %s65, %s67
    %p71 = scmp.eq.s32.totalorder %s10, 0
    %p72 = por %p70, %p71
    %p73 = scmp.ne.s32.totalorder %s65, %s67
    %p74 = scmp.eq.s32.totalorder %s15, 1
    %p75 = por %p73, %p74
    %p76 = scmp.ne.s32.totalorder %s67, %s68
    %p77 = scmp.eq.s32.totalorder %s15, 0
    %p78 = por %p76, %p77
    %p79 = scmp.ne.s32.totalorder %s67, %s68
    %p80 = scmp.eq.s32.totalorder %s16, 1
    %p81 = por %p79, %p80
    %p83 = scmp.ne.s32.totalorder %s68, %s82
    %p84 = scmp.eq.s32.totalorder %s16, 0
    %p85 = por %p83, %p84
    %s87 = sadd.s32 %s86, 1
    %p90 = scmp.eq.s32.totalorder %s10, 1
    %p91 = scmp.ne.s32.totalorder %s86, %s88
    %p92 = scmp.eq.s32.totalorder %s10, 0
    %p93 = por %p91, %p92
    %p94 = scmp.ne.s32.totalorder %s86, %s88
    %p95 = scmp.eq.s32.totalorder %s15, 1
    %p96 = por %p94, %p95
    %p97 = scmp.ne.s32.totalorder %s88, %s89
    %p98 = scmp.eq.s32.totalorder %s15, 0
    %p99 = por %p97, %p98
    %p100 = scmp.ne.s32.totalorder %s88, %s89
    %p101 = scmp.eq.s32.totalorder %s16, 1
    %p102 = por %p100, %p101
    %p104 = scmp.ne.s32.totalorder %s89, %s103
    %p105 = scmp.eq.s32.totalorder %s16, 0
    %p106 = por %p104, %p105
    %s107 = ssub.s32 %s10, %s17
    %p108 = scmp.eq.s32.totalorder %s107, 0
    %s110 = sadd.s32 %s109, 1
    %s111 = scalar_select %p108, %s109, %s110
    %p114 = pneg %p108
    %p115 = scmp.eq.s32.totalorder %s10, 1
    %p116 = por %p114, %p115
    %p117 = scmp.ne.s32.totalorder %s109, %s112
    %p118 = scmp.eq.s32.totalorder %s10, 0
    %p119 = por %p117, %p118
    %p120 = scmp.ne.s32.totalorder %s109, %s112
    %p121 = scmp.eq.s32.totalorder %s15, 1
    %p122 = por %p120, %p121
    %p123 = scmp.ne.s32.totalorder %s112, %s113
    %p124 = scmp.eq.s32.totalorder %s15, 0
    %p125 = por %p123, %p124
    %p126 = scmp.ne.s32.totalorder %s112, %s113
    %p127 = scmp.eq.s32.totalorder %s16, 1
    %p128 = por %p126, %p127
    %p130 = scmp.ne.s32.totalorder %s113, %s129
    %p131 = scmp.eq.s32.totalorder %s16, 0
    %p132 = por %p130, %p131
    %p133 = scmp.le.s32.totalorder 1, %s10
    %p134 = scmp.lt.s32.totalorder %s10, 3
    %p135 = pnand %p133, %p134
    %p136 = pneg %p135
    // Predicated region
    $region9: #{residual_block.1} parent=5 // pred_check
      _
    $region10: #{residual_block.1} parent=5 // pred_check_branch
      %138 = sbr.rel (%p135) target = $region12
    $region11: #{residual_block.1} parent=5 // pred_region
      %s139 = ssub.s32 %s10, 1
      // Predicated region
      $region13: #{residual_block.1} parent=11 // pred_check
        %p140 = pneg %p57
      $region14: #{residual_block.1} parent=11 // pred_check_branch
        %142 = sbr.rel (%p140) target = $region16
      $region15: #{residual_block.1} parent=11 // pred_region
        _
      $region16: #{residual_block.1} parent=11 // pred_fallthru
        _
      // Predicated region
      $region17: #{residual_block.1} parent=11 // pred_check
        %p143 = pneg %p78
      $region18: #{residual_block.1} parent=11 // pred_check_branch
        %145 = sbr.rel (%p143) target = $region20
      $region19: #{residual_block.1} parent=11 // pred_region
        _
      $region20: #{residual_block.1} parent=11 // pred_fallthru
        _
      // Predicated region
      $region21: #{residual_block.1} parent=11 // pred_check
        %p146 = pneg %p99
      $region22: #{residual_block.1} parent=11 // pred_check_branch
        %148 = sbr.rel (%p146) target = $region24
      $region23: #{residual_block.1} parent=11 // pred_region
        _
      $region24: #{residual_block.1} parent=11 // pred_fallthru
        _
    $region12: #{residual_block.1} parent=5 // pred_fallthru
      _
    %p149 = scmp.lt.s32.totalorder %s10, 2
    // Predicated region
    $region25: #{residual_block.1} parent=5 // pred_check
      %p150 = pneg %p149
    $region26: #{residual_block.1} parent=5 // pred_check_branch
      %152 = sbr.rel (%p150) target = $region28
    $region27: #{residual_block.1} parent=5 // pred_region
      // Predicated region
      $region29: #{residual_block.1} parent=27 // pred_check
        %p153 = pneg %p30
      $region30: #{residual_block.1} parent=27 // pred_check_branch
        %155 = sbr.rel (%p153) target = $region32
      $region31: #{residual_block.1} parent=27 // pred_region
        %p156 = scmp.lt.s32.totalorder %s10, 1
        %s157 = scalar_select %p156, %s10, 1
        %s158 = smul.addr %s157, 5
        %s159 = smul.addr %s158, 8
        %s160 = scalar_lea.vmem %s0, %s159
      $region32: #{residual_block.1} parent=27 // pred_fallthru
        _
    $region28: #{residual_block.1} parent=5 // pred_fallthru
      _
    %p161 = scmp.le.s32.totalorder 1, %s10
    %p162 = scmp.lt.s32.totalorder %s10, 3
    %p163 = pnand %p161, %p162
    %p164 = pneg %p163
    // Predicated region
    $region33: #{residual_block.1} parent=5 // pred_check
      _
    $region34: #{residual_block.1} parent=5 // pred_check_branch
      %166 = sbr.rel (%p163) target = $region36
    $region35: #{residual_block.1} parent=5 // pred_region
      %s167 = ssub.s32 %s10, 1
      %p168 = scmp.lt.s32.totalorder %s15, 1
      %s169 = scalar_select %p168, %s15, 1
      %s170 = smul.addr %s169, 5
      %s171 = smul.addr %s170, 8
      %s172 = scalar_lea.vmem %s0, %s171
      %p173 = pneg %p36
      %p174 = pneg %p33
      %p175 = pneg %p57
      %p176 = pneg %p54
      %p177 = pneg %p78
      %p178 = pneg %p75
      %p179 = pneg %p99
      %p180 = pneg %p96
      %p181 = pneg %p125
      %p182 = pneg %p122
      %p183 = scmp.lt.s32.totalorder %s15, 1
      %s184 = scalar_select %p183, %s15, 1
      %s185 = smul.addr %s184, 3
      %s186 = smul.addr %s185, 8
      %s187 = scalar_lea.vmem %s4, %s186
      %p188 = scmp.lt.s32.totalorder %s15, 1
      %s189 = scalar_select %p188, %s15, 1
      %s190 = smul.addr %s189, 5
      %s191 = smul.addr %s190, 8
      %s192 = scalar_lea.vmem %s0, %s191
      %p193 = scmp.lt.s32.totalorder %s15, 1
      %s194 = scalar_select %p193, %s15, 1
      %s195 = smul.addr %s194, 3
      %s196 = smul.addr %s195, 8
      %s197 = scalar_lea.vmem %s4, %s196
      %v199 = vld [vmem:[%s1] ss:$4 sm:$0x7]
      %vm200 = vcmp.gt.f32.partialorder %v199, 0.5
      %s201 = scalar_lea.vmem %s1, 1
      %v202 = vld [vmem:[%s201] ss:$4 sm:$0x7]
      %vm203 = vcmp.gt.f32.partialorder %v202, 0.5
      %s204 = scalar_lea.vmem %s1, 2
      %v205 = vld [vmem:[%s204] ss:$4 sm:$0x7]
      %vm206 = vcmp.gt.f32.partialorder %v205, 0.5
      %207 = vst [vmem:[#allocation2] sm:$0xff] 0.0
      %208 = vst [vmem:[#allocation2 + $0x20] sm:$0xff] 0.0
      %v209 = vld [vmem:[%s192] sm:$0xff]
      %v210 = vld [vmem:[%s192 + $0x8] sm:$0xff]
      %v211 = vld [vmem:[%s192 + $0x10] sm:$0xff]
      %v212 = vld [vmem:[%s192 + $0x18] sm:$0xff]
      %217 = vrot.lane.b32.xlu0 %v209, 19
      %v218 = vpop.permute.xlu0 %217
      %219 = vrot.lane.b32.xlu0 %v210, 19
      %v220 = vpop.permute.xlu0 %219
      %221 = vrot.lane.b32.xlu0 %v211, 19
      %v222 = vpop.permute.xlu0 %221
      %223 = vrot.lane.b32.xlu0 %v212, 19
      %v224 = vpop.permute.xlu0 %223
      %vm225 = vcmask 154624
      %v226 = vsel %vm225, %v218, %v220
      %v227 = vsel %vm225, %v220, %v222
      %v228 = vsel %vm225, %v222, %v224
      %232 = vst [vmem:[#allocation3] sm:$0xff] %v226
      %233 = vst [vmem:[#allocation3 + $0x8] sm:$0xff] %v227
      %234 = vst [vmem:[#allocation3 + $0x10] sm:$0xff] %v228
      %v235 = vld [vmem:[%s192] sm:$0xff]
      %v236 = vld [vmem:[%s192 + $0x8] sm:$0xff]
      %v237 = vld [vmem:[%s192 + $0x10] sm:$0xff]
      %v238 = vld [vmem:[%s192 + $0x18] sm:$0xff]
      %243 = vrot.lane.b32.xlu0 %v235, 18
      %v244 = vpop.permute.xlu0 %243
      %245 = vrot.lane.b32.xlu0 %v236, 18
      %v246 = vpop.permute.xlu0 %245
      %247 = vrot.lane.b32.xlu0 %v237, 18
      %v248 = vpop.permute.xlu0 %247
      %249 = vrot.lane.b32.xlu0 %v238, 18
      %v250 = vpop.permute.xlu0 %249
      %vm251 = vcmask 146432
      %v252 = vsel %vm251, %v244, %v246
      %v253 = vsel %vm251, %v246, %v248
      %v254 = vsel %vm251, %v248, %v250
      %258 = vst [vmem:[#allocation3 + $0x18] sm:$0xff] %v252
      %259 = vst [vmem:[#allocation3 + $0x20] sm:$0xff] %v253
      %260 = vst [vmem:[#allocation3 + $0x28] sm:$0xff] %v254
      %v261 = vld [vmem:[%s192] sm:$0xff]
      %v262 = vld [vmem:[%s192 + $0x8] sm:$0xff]
      %v263 = vld [vmem:[%s192 + $0x10] sm:$0xff]
      %v264 = vld [vmem:[%s192 + $0x18] sm:$0xff]
      %269 = vrot.lane.b32.xlu0 %v261, 17
      %v270 = vpop.permute.xlu0 %269
      %271 = vrot.lane.b32.xlu0 %v262, 17
      %v272 = vpop.permute.xlu0 %271
      %273 = vrot.lane.b32.xlu0 %v263, 17
      %v274 = vpop.permute.xlu0 %273
      %275 = vrot.lane.b32.xlu0 %v264, 17
      %v276 = vpop.permute.xlu0 %275
      %vm277 = vcmask 138240
      %v278 = vsel %vm277, %v270, %v272
      %v279 = vsel %vm277, %v272, %v274
      %v280 = vsel %vm277, %v274, %v276
      %284 = vst [vmem:[#allocation3 + $0x30] sm:$0xff] %v278
      %285 = vst [vmem:[#allocation3 + $0x38] sm:$0xff] %v279
      %286 = vst [vmem:[#allocation3 + $0x40] sm:$0xff] %v280
      %v287 = vld [vmem:[%s192] sm:$0xff]
      %v288 = vld [vmem:[%s192 + $0x8] sm:$0xff]
      %v289 = vld [vmem:[%s192 + $0x10] sm:$0xff]
      %v290 = vld [vmem:[%s192 + $0x18] sm:$0xff]
      %295 = vrot.lane.b32.xlu0 %v287, 1
      %v296 = vpop.permute.xlu0 %295
      %297 = vrot.lane.b32.xlu0 %v288, 1
      %v298 = vpop.permute.xlu0 %297
      %299 = vrot.lane.b32.xlu0 %v289, 1
      %v300 = vpop.permute.xlu0 %299
      %301 = vrot.lane.b32.xlu0 %v290, 1
      %v302 = vpop.permute.xlu0 %301
      %vm303 = vcmask 7168
      %v304 = vsel %vm303, %v296, %v298
      %v305 = vsel %vm303, %v298, %v300
      %v306 = vsel %vm303, %v300, %v302
      %310 = vst [vmem:[#allocation3 + $0x48] sm:$0xff] %v304
      %311 = vst [vmem:[#allocation3 + $0x50] sm:$0xff] %v305
      %312 = vst [vmem:[#allocation3 + $0x58] sm:$0xff] %v306
      %v313 = vld [vmem:[%s192 + $0x8] sm:$0xff]
      %v314 = vld [vmem:[%s192 + $0x10] sm:$0xff]
      %v315 = vld [vmem:[%s192 + $0x18] sm:$0xff]
      %316 = vst [vmem:[#allocation3 + $0x60] sm:$0xff] %v313
      %317 = vst [vmem:[#allocation3 + $0x68] sm:$0xff] %v314
      %318 = vst [vmem:[#allocation3 + $0x70] sm:$0xff] %v315
      %v319 = vld [vmem:[%s192 + $0x8] sm:$0xff]
      %v320 = vld [vmem:[%s192 + $0x10] sm:$0xff]
      %v321 = vld [vmem:[%s192 + $0x18] sm:$0xff]
      %v322 = vld [vmem:[%s192 + $0x20] sm:$0xff]
      %327 = vrot.lane.b32.xlu0 %v319, 127
      %v328 = vpop.permute.xlu0 %327
      %329 = vrot.lane.b32.xlu0 %v320, 127
      %v330 = vpop.permute.xlu0 %329
      %331 = vrot.lane.b32.xlu0 %v321, 127
      %v332 = vpop.permute.xlu0 %331
      %333 = vrot.lane.b32.xlu0 %v322, 127
      %v334 = vpop.permute.xlu0 %333
      %vm335 = vcmask 1039360
      %v336 = vsel %vm335, %v328, %v330
      %v337 = vsel %vm335, %v330, %v332
      %v338 = vsel %vm335, %v332, %v334
      %342 = vst [vmem:[#allocation3 + $0x78] sm:$0xff] %v336
      %343 = vst [vmem:[#allocation3 + $0x80] sm:$0xff] %v337
      %344 = vst [vmem:[#allocation3 + $0x88] sm:$0xff] %v338
      %v345 = vld [vmem:[%s192 + $0x8] sm:$0xff]
      %v346 = vld [vmem:[%s192 + $0x10] sm:$0xff]
      %v347 = vld [vmem:[%s192 + $0x18] sm:$0xff]
      %v348 = vld [vmem:[%s192 + $0x20] sm:$0xff]
      %353 = vrot.lane.b32.xlu0 %v345, 111
      %v354 = vpop.permute.xlu0 %353
      %355 = vrot.lane.b32.xlu0 %v346, 111
      %v356 = vpop.permute.xlu0 %355
      %357 = vrot.lane.b32.xlu0 %v347, 111
      %v358 = vpop.permute.xlu0 %357
      %359 = vrot.lane.b32.xlu0 %v348, 111
      %v360 = vpop.permute.xlu0 %359
      %vm361 = vcmask 908288
      %v362 = vsel %vm361, %v354, %v356
      %v363 = vsel %vm361, %v356, %v358
      %v364 = vsel %vm361, %v358, %v360
      %368 = vst [vmem:[#allocation3 + $0x90] sm:$0xff] %v362
      %369 = vst [vmem:[#allocation3 + $0x98] sm:$0xff] %v363
      %370 = vst [vmem:[#allocation3 + $0xa0] sm:$0xff] %v364
      %v371 = vld [vmem:[%s192 + $0x8] sm:$0xff]
      %v372 = vld [vmem:[%s192 + $0x10] sm:$0xff]
      %v373 = vld [vmem:[%s192 + $0x18] sm:$0xff]
      %v374 = vld [vmem:[%s192 + $0x20] sm:$0xff]
      %379 = vrot.lane.b32.xlu0 %v371, 110
      %v380 = vpop.permute.xlu0 %379
      %381 = vrot.lane.b32.xlu0 %v372, 110
      %v382 = vpop.permute.xlu0 %381
      %383 = vrot.lane.b32.xlu0 %v373, 110
      %v384 = vpop.permute.xlu0 %383
      %385 = vrot.lane.b32.xlu0 %v374, 110
      %v386 = vpop.permute.xlu0 %385
      %vm387 = vcmask 900096
      %v388 = vsel %vm387, %v380, %v382
      %v389 = vsel %vm387, %v382, %v384
      %v390 = vsel %vm387, %v384, %v386
      %394 = vst [vmem:[#allocation3 + $0xa8] sm:$0xff] %v388
      %395 = vst [vmem:[#allocation3 + $0xb0] sm:$0xff] %v389
      %396 = vst [vmem:[#allocation3 + $0xb8] sm:$0xff] %v390
      %v397 = vld [vmem:[%s192 + $0x8] sm:$0xff]
      %v398 = vld [vmem:[%s192 + $0x10] sm:$0xff]
      %v399 = vld [vmem:[%s192 + $0x18] sm:$0xff]
      %v400 = vld [vmem:[%s192 + $0x20] sm:$0xff]
      %405 = vrot.lane.b32.xlu0 %v397, 109
      %v406 = vpop.permute.xlu0 %405
      %407 = vrot.lane.b32.xlu0 %v398, 109
      %v408 = vpop.permute.xlu0 %407
      %409 = vrot.lane.b32.xlu0 %v399, 109
      %v410 = vpop.permute.xlu0 %409
      %411 = vrot.lane.b32.xlu0 %v400, 109
      %v412 = vpop.permute.xlu0 %411
      %vm413 = vcmask 891904
      %v414 = vsel %vm413, %v406, %v408
      %v415 = vsel %vm413, %v408, %v410
      %v416 = vsel %vm413, %v410, %v412
      %420 = vst [vmem:[#allocation3 + $0xc0] sm:$0xff] %v414
      %421 = vst [vmem:[#allocation3 + $0xc8] sm:$0xff] %v415
      %422 = vst [vmem:[#allocation3 + $0xd0] sm:$0xff] %v416
      %v423 = vld [vmem:[%s2] sm:$0xf]
      %v424 = vld [vmem:[#allocation3] sm:$0xff]
      %v425 = vld [vmem:[#allocation3 + $0x8] sm:$0xff]
      %v426 = vld [vmem:[#allocation3 + $0x10] sm:$0xff]
      %v427 = vld [vmem:[#allocation3 + $0x18] sm:$0xff]
      %v428 = vld [vmem:[#allocation3 + $0x20] sm:$0xff]
      %v429 = vld [vmem:[#allocation3 + $0x28] sm:$0xff]
      %v430 = vld [vmem:[#allocation3 + $0x30] sm:$0xff]
      %v431 = vld [vmem:[#allocation3 + $0x38] sm:$0xff]
      %v432 = vld [vmem:[#allocation3 + $0x40] sm:$0xff]
      %v433 = vld [vmem:[#allocation3 + $0x48] sm:$0xff]
      %v434 = vld [vmem:[#allocation3 + $0x50] sm:$0xff]
      %v435 = vld [vmem:[#allocation3 + $0x58] sm:$0xff]
      %v436 = vld [vmem:[#allocation3 + $0x60] sm:$0xff]
      %v437 = vld [vmem:[#allocation3 + $0x68] sm:$0xff]
      %v438 = vld [vmem:[#allocation3 + $0x70] sm:$0xff]
      %v439 = vld [vmem:[#allocation3 + $0x78] sm:$0xff]
      %v440 = vld [vmem:[#allocation3 + $0x80] sm:$0xff]
      %v441 = vld [vmem:[#allocation3 + $0x88] sm:$0xff]
      %v442 = vld [vmem:[#allocation3 + $0x90] sm:$0xff]
      %v443 = vld [vmem:[#allocation3 + $0x98] sm:$0xff]
      %v444 = vld [vmem:[#allocation3 + $0xa0] sm:$0xff]
      %v445 = vld [vmem:[#allocation3 + $0xa8] sm:$0xff]
      %v446 = vld [vmem:[#allocation3 + $0xb0] sm:$0xff]
      %v447 = vld [vmem:[#allocation3 + $0xb8] sm:$0xff]
      %v448 = vld [vmem:[#allocation3 + $0xc0] sm:$0xff]
      %v449 = vld [vmem:[#allocation3 + $0xc8] sm:$0xff]
      %v450 = vld [vmem:[#allocation3 + $0xd0] sm:$0xff]
      %v451 = vpack.c.bf16 %v427, %v424
      %v452 = vpack.c.bf16 %v428, %v425
      %v453 = vpack.c.bf16 %v429, %v426
      %v454 = vpack.c.bf16 %v433, %v430
      %v455 = vpack.c.bf16 %v434, %v431
      %v456 = vpack.c.bf16 %v435, %v432
      %v457 = vpack.c.bf16 %v439, %v436
      %v458 = vpack.c.bf16 %v440, %v437
      %v459 = vpack.c.bf16 %v441, %v438
      %v460 = vpack.c.bf16 %v445, %v442
      %v461 = vpack.c.bf16 %v446, %v443
      %v462 = vpack.c.bf16 %v447, %v444
      %v463 = vpack.c.bf16 %v448, %v448
      %v464 = vpack.c.bf16 %v449, %v449
      %v465 = vpack.c.bf16 %v450, %v450
      %vm466 = vcmask 588800
      %v468 = vsel %vm466, %v423, 0
      %vm470 = vcmask 1043456
      %v472 = vsel %vm470, %v463, 0
      %v475 = vsel %vm470, %v464, 0
      %v478 = vsel %vm470, %v465, 0
      %480 = vmatprep.subr.bf16.mxu0 %v452
      %481 = vmatpush1.bf16.msra.mxu0 %v451
      %482 = vmatprep.subr.bf16.mxu0 %v455
      %483 = vmatpush1.bf16.msra.mxu0 %v454
      %484 = vmatprep.subr.bf16.mxu0 %v458
      %485 = vmatpush1.bf16.msra.mxu0 %v457
      %486 = vmatprep.subr.bf16.mxu0 %v461
      %487 = vmatpush1.bf16.msra.mxu0 %v460
      %488 = vmatprep.subr.bf16.mxu0 %v475
      %489 = vmatpush1.bf16.msra.mxu0 %v472
      %490 = vmatprep.subr.bf16.mxu0 0
      %491 = vmatpush1.bf16.msra.mxu0 0
      %492 = vmatprep.subr.bf16.mxu0 0
      %493 = vmatpush1.bf16.msra.mxu0 0
      %494 = vmatprep.subr.bf16.mxu0 0
      %495 = vmatpush1.bf16.msra.mxu0 0
      %496 = vmatprep.subr.bf16.mxu0 0
      %497 = vmatpush1.bf16.msra.mxu0 0
      %498 = vmatprep.subr.bf16.mxu0 0
      %499 = vmatpush1.bf16.msra.mxu0 0
      %500 = vmatprep.subr.bf16.mxu0 0
      %501 = vmatpush1.bf16.msra.mxu0 0
      %502 = vmatprep.subr.bf16.mxu0 0
      %503 = vmatpush1.bf16.msra.mxu0 0
      %504 = vmatprep.subr.bf16.mxu0 0
      %505 = vmatpush1.bf16.msra.mxu0 0
      %506 = vmatprep.subr.bf16.mxu0 0
      %507 = vmatpush1.bf16.msra.mxu0 0
      %508 = vmatprep.subr.bf16.mxu0 0
      %509 = vmatpush1.bf16.msra.mxu0 0
      %510 = vmatprep.subr.bf16.mxu0 0
      %511 = vmatpush1.bf16.msra.mxu0 0
      %512 = vmatprep.mubr.bf16.mxu0 0
      %513 = vmatmul.mubr.bf16.gmra.mrb[0].mxu0 %v468
      %v514 = vpop.f32.mrb[0].mxu0
      %v515 = vadd.f32 0.0, %v514
      %v516 = vpop.f32.mrb[0].mxu0
      %v517 = vadd.f32 0.0, %v516
      %v518 = vpop.f32.mrb[0].mxu0
      %v519 = vpop.f32.mrb[0].mxu0
      %520 = vdwg.mxu0
      %521 = vmatprep.subr.bf16.mxu0 0
      %522 = vmatpush1.bf16.msra.mxu0 %v453
      %523 = vmatprep.subr.bf16.mxu0 0
      %524 = vmatpush1.bf16.msra.mxu0 %v456
      %525 = vmatprep.subr.bf16.mxu0 0
      %526 = vmatpush1.bf16.msra.mxu0 %v459
      %527 = vmatprep.subr.bf16.mxu0 0
      %528 = vmatpush1.bf16.msra.mxu0 %v462
      %529 = vmatprep.subr.bf16.mxu0 0
      %530 = vmatpush1.bf16.msra.mxu0 %v478
      %531 = vmatprep.subr.bf16.mxu0 0
      %532 = vmatpush1.bf16.msra.mxu0 0
      %533 = vmatprep.subr.bf16.mxu0 0
      %534 = vmatpush1.bf16.msra.mxu0 0
      %535 = vmatprep.subr.bf16.mxu0 0
      %536 = vmatpush1.bf16.msra.mxu0 0
      %537 = vmatprep.subr.bf16.mxu0 0
      %538 = vmatpush1.bf16.msra.mxu0 0
      %539 = vmatprep.subr.bf16.mxu0 0
      %540 = vmatpush1.bf16.msra.mxu0 0
      %541 = vmatprep.subr.bf16.mxu0 0
      %542 = vmatpush1.bf16.msra.mxu0 0
      %543 = vmatprep.subr.bf16.mxu0 0
      %544 = vmatpush1.bf16.msra.mxu0 0
      %545 = vmatprep.subr.bf16.mxu0 0
      %546 = vmatpush1.bf16.msra.mxu0 0
      %547 = vmatprep.subr.bf16.mxu0 0
      %548 = vmatpush1.bf16.msra.mxu0 0
      %549 = vmatprep.subr.bf16.mxu0 0
      %550 = vmatpush1.bf16.msra.mxu0 0
      %551 = vmatprep.subr.bf16.mxu0 0
      %552 = vmatpush1.bf16.msra.mxu0 0
      %553 = vmatprep.mubr.bf16.mxu0 0
      %554 = vmatmul.mubr.bf16.gmra.mrb[0].mxu0 %v468
      %v555 = vpop.f32.mrb[0].mxu0
      %v556 = vadd.f32 0.0, %v555
      %v557 = vpop.f32.mrb[0].mxu0
      %v558 = vpop.f32.mrb[0].mxu0
      %v559 = vpop.f32.mrb[0].mxu0
      %560 = vdwg.mxu0
      %v561 = vsel %vm200, 1, 0
      %v562 = vlaneseq
      %v563 = vshrl.u32 %v562, 7
      %v564 = vsub.s32 0, %v563
      %v565 = vrot.slane %v561, %v564
      %v566 = vlaneseq
      %v567 = vshrl.u32 %v566, 7
      %v568 = vsub.s32 1, %v567
      %v569 = vrot.slane %v561, %v568
      %v570 = vlaneseq
      %v571 = vshrl.u32 %v570, 7
      %v572 = vsub.s32 2, %v571
      %v573 = vrot.slane %v561, %v572
      %vm574 = vcmp.eq.s32.totalorder %v565, 1
      %vm575 = vcmp.eq.s32.totalorder %v569, 1
      %vm576 = vcmp.eq.s32.totalorder %v573, 1
      %v577 = vsel %vm574, %v515, 0.0
      %v578 = vsel %vm575, %v517, 0.0
      %v579 = vsel %vm576, %v556, 0.0
      %v580 = vadd.f32 %v577, %v578
      %v581 = vadd.f32 %v580, %v579
      %582 = vadd.xlane.f32.xlu0 %v581
      %v583 = vpop.xlane.xlu0 %582
      %v584 = vmul.f32 %v577, %v577
      %v585 = vmul.f32 %v578, %v578
      %v586 = vmul.f32 %v579, %v579
      %v587 = vadd.f32 %v584, %v585
      %v588 = vadd.f32 %v587, %v586
      %589 = vadd.xlane.f32.xlu0 %v588
      %v590 = vpop.xlane.xlu0 %589
      %v591 = vmul.f32 %v583, 0.00390625
      %v592 = vmul.f32 %v590, 0.00390625
      %v593 = vmul.f32 %v591, %v591
      %v594 = vsub.f32 %v592, %v593
      %v595 = vmax.f32 %v594, 0.0
      %v596 = vsub.f32 %v515, %v591
      %v597 = vsub.f32 %v517, %v591
      %v598 = vsub.f32 %v556, %v591
      %v599 = vadd.f32 %v595, 1e-05
      %v600 = vrsqrt.pop %v599
      %v601 = vmul.f32 %v596, %v600
      %v602 = vmul.f32 %v597, %v600
      %v603 = vmul.f32 %v598, %v600
      %v604 = vmax.f32 %v601, 0.0
      %v605 = vmax.f32 %v602, 0.0
      %v606 = vmax.f32 %v603, 0.0
      %607 = vst [vmem:[#allocation2 + $0x8] sm:$0xff] %v604
      %608 = vst [vmem:[#allocation2 + $0x10] sm:$0xff] %v605
      %609 = vst [vmem:[#allocation2 + $0x18] sm:$0xff] %v606
      %v610 = vld [vmem:[#allocation2 + $0x8] sm:$0xff]
      %612 = vrot.lane.b32.xlu0 %v610, 92
      %v613 = vpop.permute.xlu0 %612
      %615 = vst.msk [vmem:[#allocation2 + $0x8] sm:$0xff] %vm251, %v613
      %v616 = vld [vmem:[#allocation2 + $0x18] sm:$0xff]
      %618 = vrot.lane.b32.xlu0 %v616, 36
      %v619 = vpop.permute.xlu0 %618
      %vm621 = vcmask 556432
      %622 = vst.msk [vmem:[#allocation2 + $0x18] sm:$0xff] %vm621, %v619
      %v623 = vld [vmem:[#allocation2 + $0x8] sm:$0xff]
      %v624 = vld [vmem:[#allocation2 + $0x10] sm:$0xff]
      %v625 = vld [vmem:[#allocation2 + $0x18] sm:$0xff]
      %v626 = vld [vmem:[#allocation2 + $0x8] sm:$0xff]
      %v627 = vld [vmem:[#allocation2 + $0x10] sm:$0xff]
      %v628 = vld [vmem:[#allocation2 + $0x18] sm:$0xff]
      %v629 = vld [vmem:[#allocation2 + $0x20] sm:$0xff]
      %v630 = vld [vmem:[#allocation2] sm:$0xff]
      %v631 = vsel %vm203, 1, 0
      %v632 = vlaneseq
      %v633 = vshrl.u32 %v632, 7
      %v634 = vsub.s32 0, %v633
      %v635 = vrot.slane %v631, %v634
      %v636 = vlaneseq
      %v637 = vshrl.u32 %v636, 7
      %v638 = vsub.s32 1, %v637
      %v639 = vrot.slane %v631, %v638
      %v640 = vlaneseq
      %v641 = vshrl.u32 %v640, 7
      %v642 = vsub.s32 2, %v641
      %v643 = vrot.slane %v631, %v642
      %vm644 = vcmp.eq.s32.totalorder %v635, 1
      %vm645 = vcmp.eq.s32.totalorder %v639, 1
      %vm646 = vcmp.eq.s32.totalorder %v643, 1
      %651 = vrot.lane.b32.xlu0 %v626, 126
      %v652 = vpop.permute.xlu0 %651
      %653 = vrot.lane.b32.xlu0 %v627, 126
      %v654 = vpop.permute.xlu0 %653
      %655 = vrot.lane.b32.xlu0 %v628, 126
      %v656 = vpop.permute.xlu0 %655
      %657 = vrot.lane.b32.xlu0 %v629, 126
      %v658 = vpop.permute.xlu0 %657
      %vm659 = vcmask 1031168
      %v660 = vsel %vm659, %v652, %v654
      %v661 = vsel %vm659, %v654, %v656
      %v662 = vsel %vm659, %v656, %v658
      %v666 = vsel %vm644, %v660, %v623
      %v667 = vsel %vm645, %v661, %v624
      %v668 = vsel %vm646, %v662, %v625
      %v669 = vsel %vm206, 1, 0
      %v670 = vlaneseq
      %v671 = vshrl.u32 %v670, 7
      %v672 = vsub.s32 0, %v671
      %v673 = vrot.slane %v669, %v672
      %v674 = vlaneseq
      %v675 = vshrl.u32 %v674, 7
      %v676 = vsub.s32 1, %v675
      %v677 = vrot.slane %v669, %v676
      %v678 = vlaneseq
      %v679 = vshrl.u32 %v678, 7
      %v680 = vsub.s32 2, %v679
      %v681 = vrot.slane %v669, %v680
      %vm682 = vcmp.eq.s32.totalorder %v673, 1
      %vm683 = vcmp.eq.s32.totalorder %v677, 1
      %vm684 = vcmp.eq.s32.totalorder %v681, 1
      %689 = vrot.lane.b32.xlu0 %v630, 2
      %v690 = vpop.permute.xlu0 %689
      %691 = vrot.lane.b32.xlu0 %v623, 2
      %v692 = vpop.permute.xlu0 %691
      %693 = vrot.lane.b32.xlu0 %v624, 2
      %v694 = vpop.permute.xlu0 %693
      %695 = vrot.lane.b32.xlu0 %v625, 2
      %v696 = vpop.permute.xlu0 %695
      %vm697 = vcmask 15360
      %v698 = vsel %vm697, %v690, %v692
      %v699 = vsel %vm697, %v692, %v694
      %v700 = vsel %vm697, %v694, %v696
      %v704 = vsel %vm682, %v698, %v666
      %v705 = vsel %vm683, %v699, %v667
      %v706 = vsel %vm684, %v700, %v668
      %707 = vst [vmem:[#allocation2 + $0x8] sm:$0xff] %v704
      %708 = vst [vmem:[#allocation2 + $0x10] sm:$0xff] %v705
      %709 = vst [vmem:[#allocation2 + $0x18] sm:$0xff] %v706
      %v710 = vld [vmem:[#allocation2] sm:$0xff]
      %v711 = vld [vmem:[#allocation2 + $0x8] sm:$0xff]
      %v712 = vld [vmem:[#allocation2 + $0x10] sm:$0xff]
      %v713 = vld [vmem:[#allocation2 + $0x18] sm:$0xff]
      %718 = vrot.lane.b32.xlu0 %v710, 19
      %v719 = vpop.permute.xlu0 %718
      %720 = vrot.lane.b32.xlu0 %v711, 19
      %v721 = vpop.permute.xlu0 %720
      %722 = vrot.lane.b32.xlu0 %v712, 19
      %v723 = vpop.permute.xlu0 %722
      %724 = vrot.lane.b32.xlu0 %v713, 19
      %v725 = vpop.permute.xlu0 %724
      %v726 = vsel %vm225, %v719, %v721
      %v727 = vsel %vm225, %v721, %v723
      %v728 = vsel %vm225, %v723, %v725
      %732 = vst [vmem:[#allocation3] sm:$0xff] %v726
      %733 = vst [vmem:[#allocation3 + $0x8] sm:$0xff] %v727
      %734 = vst [vmem:[#allocation3 + $0x10] sm:$0xff] %v728
      %v735 = vld [vmem:[#allocation2] sm:$0xff]
      %v736 = vld [vmem:[#allocation2 + $0x8] sm:$0xff]
      %v737 = vld [vmem:[#allocation2 + $0x10] sm:$0xff]
      %v738 = vld [vmem:[#allocation2 + $0x18] sm:$0xff]
      %743 = vrot.lane.b32.xlu0 %v735, 18
      %v744 = vpop.permute.xlu0 %743
      %745 = vrot.lane.b32.xlu0 %v736, 18
      %v746 = vpop.permute.xlu0 %745
      %747 = vrot.lane.b32.xlu0 %v737, 18
      %v748 = vpop.permute.xlu0 %747
      %749 = vrot.lane.b32.xlu0 %v738, 18
      %v750 = vpop.permute.xlu0 %749
      %v751 = vsel %vm251, %v744, %v746
      %v752 = vsel %vm251, %v746, %v748
      %v753 = vsel %vm251, %v748, %v750
      %757 = vst [vmem:[#allocation3 + $0x18] sm:$0xff] %v751
      %758 = vst [vmem:[#allocation3 + $0x20] sm:$0xff] %v752
      %759 = vst [vmem:[#allocation3 + $0x28] sm:$0xff] %v753
      %v760 = vld [vmem:[#allocation2] sm:$0xff]
      %v761 = vld [vmem:[#allocation2 + $0x8] sm:$0xff]
      %v762 = vld [vmem:[#allocation2 + $0x10] sm:$0xff]
      %v763 = vld [vmem:[#allocation2 + $0x18] sm:$0xff]
      %768 = vrot.lane.b32.xlu0 %v760, 17
      %v769 = vpop.permute.xlu0 %768
      %770 = vrot.lane.b32.xlu0 %v761, 17
      %v771 = vpop.permute.xlu0 %770
      %772 = vrot.lane.b32.xlu0 %v762, 17
      %v773 = vpop.permute.xlu0 %772
      %774 = vrot.lane.b32.xlu0 %v763, 17
      %v775 = vpop.permute.xlu0 %774
      %v776 = vsel %vm277, %v769, %v771
      %v777 = vsel %vm277, %v771, %v773
      %v778 = vsel %vm277, %v773, %v775
      %782 = vst [vmem:[#allocation3 + $0x30] sm:$0xff] %v776
      %783 = vst [vmem:[#allocation3 + $0x38] sm:$0xff] %v777
      %784 = vst [vmem:[#allocation3 + $0x40] sm:$0xff] %v778
      %v785 = vld [vmem:[#allocation2] sm:$0xff]
      %v786 = vld [vmem:[#allocation2 + $0x8] sm:$0xff]
      %v787 = vld [vmem:[#allocation2 + $0x10] sm:$0xff]
      %v788 = vld [vmem:[#allocation2 + $0x18] sm:$0xff]
      %793 = vrot.lane.b32.xlu0 %v785, 1
      %v794 = vpop.permute.xlu0 %793
      %795 = vrot.lane.b32.xlu0 %v786, 1
      %v796 = vpop.permute.xlu0 %795
      %797 = vrot.lane.b32.xlu0 %v787, 1
      %v798 = vpop.permute.xlu0 %797
      %799 = vrot.lane.b32.xlu0 %v788, 1
      %v800 = vpop.permute.xlu0 %799
      %v801 = vsel %vm303, %v794, %v796
      %v802 = vsel %vm303, %v796, %v798
      %v803 = vsel %vm303, %v798, %v800
      %807 = vst [vmem:[#allocation3 + $0x48] sm:$0xff] %v801
      %808 = vst [vmem:[#allocation3 + $0x50] sm:$0xff] %v802
      %809 = vst [vmem:[#allocation3 + $0x58] sm:$0xff] %v803
      %v810 = vld [vmem:[#allocation2 + $0x8] sm:$0xff]
      %v811 = vld [vmem:[#allocation2 + $0x10] sm:$0xff]
      %v812 = vld [vmem:[#allocation2 + $0x18] sm:$0xff]
      %813 = vst [vmem:[#allocation3 + $0x60] sm:$0xff] %v810
      %814 = vst [vmem:[#allocation3 + $0x68] sm:$0xff] %v811
      %815 = vst [vmem:[#allocation3 + $0x70] sm:$0xff] %v812
      %v816 = vld [vmem:[#allocation2 + $0x8] sm:$0xff]
      %v817 = vld [vmem:[#allocation2 + $0x10] sm:$0xff]
      %v818 = vld [vmem:[#allocation2 + $0x18] sm:$0xff]
      %v819 = vld [vmem:[#allocation2 + $0x20] sm:$0xff]
      %824 = vrot.lane.b32.xlu0 %v816, 127
      %v825 = vpop.permute.xlu0 %824
      %826 = vrot.lane.b32.xlu0 %v817, 127
      %v827 = vpop.permute.xlu0 %826
      %828 = vrot.lane.b32.xlu0 %v818, 127
      %v829 = vpop.permute.xlu0 %828
      %830 = vrot.lane.b32.xlu0 %v819, 127
      %v831 = vpop.permute.xlu0 %830
      %v832 = vsel %vm335, %v825, %v827
      %v833 = vsel %vm335, %v827, %v829
      %v834 = vsel %vm335, %v829, %v831
      %838 = vst [vmem:[#allocation3 + $0x78] sm:$0xff] %v832
      %839 = vst [vmem:[#allocation3 + $0x80] sm:$0xff] %v833
      %840 = vst [vmem:[#allocation3 + $0x88] sm:$0xff] %v834
      %v841 = vld [vmem:[#allocation2 + $0x8] sm:$0xff]
      %v842 = vld [vmem:[#allocation2 + $0x10] sm:$0xff]
      %v843 = vld [vmem:[#allocation2 + $0x18] sm:$0xff]
      %v844 = vld [vmem:[#allocation2 + $0x20] sm:$0xff]
      %849 = vrot.lane.b32.xlu0 %v841, 111
      %v850 = vpop.permute.xlu0 %849
      %851 = vrot.lane.b32.xlu0 %v842, 111
      %v852 = vpop.permute.xlu0 %851
      %853 = vrot.lane.b32.xlu0 %v843, 111
      %v854 = vpop.permute.xlu0 %853
      %855 = vrot.lane.b32.xlu0 %v844, 111
      %v856 = vpop.permute.xlu0 %855
      %v857 = vsel %vm361, %v850, %v852
      %v858 = vsel %vm361, %v852, %v854
      %v859 = vsel %vm361, %v854, %v856
      %863 = vst [vmem:[#allocation3 + $0x90] sm:$0xff] %v857
      %864 = vst [vmem:[#allocation3 + $0x98] sm:$0xff] %v858
      %865 = vst [vmem:[#allocation3 + $0xa0] sm:$0xff] %v859
      %v866 = vld [vmem:[#allocation2 + $0x8] sm:$0xff]
      %v867 = vld [vmem:[#allocation2 + $0x10] sm:$0xff]
      %v868 = vld [vmem:[#allocation2 + $0x18] sm:$0xff]
      %v869 = vld [vmem:[#allocation2 + $0x20] sm:$0xff]
      %874 = vrot.lane.b32.xlu0 %v866, 110
      %v875 = vpop.permute.xlu0 %874
      %876 = vrot.lane.b32.xlu0 %v867, 110
      %v877 = vpop.permute.xlu0 %876
      %878 = vrot.lane.b32.xlu0 %v868, 110
      %v879 = vpop.permute.xlu0 %878
      %880 = vrot.lane.b32.xlu0 %v869, 110
      %v881 = vpop.permute.xlu0 %880
      %v882 = vsel %vm387, %v875, %v877
      %v883 = vsel %vm387, %v877, %v879
      %v884 = vsel %vm387, %v879, %v881
      %888 = vst [vmem:[#allocation3 + $0xa8] sm:$0xff] %v882
      %889 = vst [vmem:[#allocation3 + $0xb0] sm:$0xff] %v883
      %890 = vst [vmem:[#allocation3 + $0xb8] sm:$0xff] %v884
      %v891 = vld [vmem:[#allocation2 + $0x8] sm:$0xff]
      %v892 = vld [vmem:[#allocation2 + $0x10] sm:$0xff]
      %v893 = vld [vmem:[#allocation2 + $0x18] sm:$0xff]
      %v894 = vld [vmem:[#allocation2 + $0x20] sm:$0xff]
      %899 = vrot.lane.b32.xlu0 %v891, 109
      %v900 = vpop.permute.xlu0 %899
      %901 = vrot.lane.b32.xlu0 %v892, 109
      %v902 = vpop.permute.xlu0 %901
      %903 = vrot.lane.b32.xlu0 %v893, 109
      %v904 = vpop.permute.xlu0 %903
      %905 = vrot.lane.b32.xlu0 %v894, 109
      %v906 = vpop.permute.xlu0 %905
      %v907 = vsel %vm413, %v900, %v902
      %v908 = vsel %vm413, %v902, %v904
      %v909 = vsel %vm413, %v904, %v906
      %913 = vst [vmem:[#allocation3 + $0xc0] sm:$0xff] %v907
      %914 = vst [vmem:[#allocation3 + $0xc8] sm:$0xff] %v908
      %915 = vst [vmem:[#allocation3 + $0xd0] sm:$0xff] %v909
      %v916 = vld [vmem:[%s3] sm:$0xf]
      %v917 = vld [vmem:[#allocation3] sm:$0xff]
      %v918 = vld [vmem:[#allocation3 + $0x8] sm:$0xff]
      %v919 = vld [vmem:[#allocation3 + $0x10] sm:$0xff]
      %v920 = vld [vmem:[#allocation3 + $0x18] sm:$0xff]
      %v921 = vld [vmem:[#allocation3 + $0x20] sm:$0xff]
      %v922 = vld [vmem:[#allocation3 + $0x28] sm:$0xff]
      %v923 = vld [vmem:[#allocation3 + $0x30] sm:$0xff]
      %v924 = vld [vmem:[#allocation3 + $0x38] sm:$0xff]
      %v925 = vld [vmem:[#allocation3 + $0x40] sm:$0xff]
      %v926 = vld [vmem:[#allocation3 + $0x48] sm:$0xff]
      %v927 = vld [vmem:[#allocation3 + $0x50] sm:$0xff]
      %v928 = vld [vmem:[#allocation3 + $0x58] sm:$0xff]
      %v929 = vld [vmem:[#allocation3 + $0x60] sm:$0xff]
      %v930 = vld [vmem:[#allocation3 + $0x68] sm:$0xff]
      %v931 = vld [vmem:[#allocation3 + $0x70] sm:$0xff]
      %v932 = vld [vmem:[#allocation3 + $0x78] sm:$0xff]
      %v933 = vld [vmem:[#allocation3 + $0x80] sm:$0xff]
      %v934 = vld [vmem:[#allocation3 + $0x88] sm:$0xff]
      %v935 = vld [vmem:[#allocation3 + $0x90] sm:$0xff]
      %v936 = vld [vmem:[#allocation3 + $0x98] sm:$0xff]
      %v937 = vld [vmem:[#allocation3 + $0xa0] sm:$0xff]
      %v938 = vld [vmem:[#allocation3 + $0xa8] sm:$0xff]
      %v939 = vld [vmem:[#allocation3 + $0xb0] sm:$0xff]
      %v940 = vld [vmem:[#allocation3 + $0xb8] sm:$0xff]
      %v941 = vld [vmem:[#allocation3 + $0xc0] sm:$0xff]
      %v942 = vld [vmem:[#allocation3 + $0xc8] sm:$0xff]
      %v943 = vld [vmem:[#allocation3 + $0xd0] sm:$0xff]
      %v944 = vpack.c.bf16 %v920, %v917
      %v945 = vpack.c.bf16 %v921, %v918
      %v946 = vpack.c.bf16 %v922, %v919
      %v947 = vpack.c.bf16 %v926, %v923
      %v948 = vpack.c.bf16 %v927, %v924
      %v949 = vpack.c.bf16 %v928, %v925
      %v950 = vpack.c.bf16 %v932, %v929
      %v951 = vpack.c.bf16 %v933, %v930
      %v952 = vpack.c.bf16 %v934, %v931
      %v953 = vpack.c.bf16 %v938, %v935
      %v954 = vpack.c.bf16 %v939, %v936
      %v955 = vpack.c.bf16 %v940, %v937
      %v956 = vpack.c.bf16 %v941, %v941
      %v957 = vpack.c.bf16 %v942, %v942
      %v958 = vpack.c.bf16 %v943, %v943
      %v960 = vsel %vm466, %v916, 0
      %v963 = vsel %vm470, %v956, 0
      %v966 = vsel %vm470, %v957, 0
      %v969 = vsel %vm470, %v958, 0
      %971 = vmatprep.subr.bf16.mxu0 %v945
      %972 = vmatpush1.bf16.msra.mxu0 %v944
      %973 = vmatprep.subr.bf16.mxu0 %v948
      %974 = vmatpush1.bf16.msra.mxu0 %v947
      %975 = vmatprep.subr.bf16.mxu0 %v951
      %976 = vmatpush1.bf16.msra.mxu0 %v950
      %977 = vmatprep.subr.bf16.mxu0 %v954
      %978 = vmatpush1.bf16.msra.mxu0 %v953
      %979 = vmatprep.subr.bf16.mxu0 %v966
      %980 = vmatpush1.bf16.msra.mxu0 %v963
      %981 = vmatprep.subr.bf16.mxu0 0
      %982 = vmatpush1.bf16.msra.mxu0 0
      %983 = vmatprep.subr.bf16.mxu0 0
      %984 = vmatpush1.bf16.msra.mxu0 0
      %985 = vmatprep.subr.bf16.mxu0 0
      %986 = vmatpush1.bf16.msra.mxu0 0
      %987 = vmatprep.subr.bf16.mxu0 0
      %988 = vmatpush1.bf16.msra.mxu0 0
      %989 = vmatprep.subr.bf16.mxu0 0
      %990 = vmatpush1.bf16.msra.mxu0 0
      %991 = vmatprep.subr.bf16.mxu0 0
      %992 = vmatpush1.bf16.msra.mxu0 0
      %993 = vmatprep.subr.bf16.mxu0 0
      %994 = vmatpush1.bf16.msra.mxu0 0
      %995 = vmatprep.subr.bf16.mxu0 0
      %996 = vmatpush1.bf16.msra.mxu0 0
      %997 = vmatprep.subr.bf16.mxu0 0
      %998 = vmatpush1.bf16.msra.mxu0 0
      %999 = vmatprep.subr.bf16.mxu0 0
      %1000 = vmatpush1.bf16.msra.mxu0 0
      %1001 = vmatprep.subr.bf16.mxu0 0
      %1002 = vmatpush1.bf16.msra.mxu0 0
      %1003 = vmatprep.mubr.bf16.mxu0 0
      %1004 = vmatmul.mubr.bf16.gmra.mrb[0].mxu0 %v960
      %v1005 = vpop.f32.mrb[0].mxu0
      %v1006 = vadd.f32 0.0, %v1005
      %v1007 = vpop.f32.mrb[0].mxu0
      %v1008 = vadd.f32 0.0, %v1007
      %v1009 = vpop.f32.mrb[0].mxu0
      %v1010 = vpop.f32.mrb[0].mxu0
      %1011 = vdwg.mxu0
      %1012 = vmatprep.subr.bf16.mxu0 0
      %1013 = vmatpush1.bf16.msra.mxu0 %v946
      %1014 = vmatprep.subr.bf16.mxu0 0
      %1015 = vmatpush1.bf16.msra.mxu0 %v949
      %1016 = vmatprep.subr.bf16.mxu0 0
      %1017 = vmatpush1.bf16.msra.mxu0 %v952
      %1018 = vmatprep.subr.bf16.mxu0 0
      %1019 = vmatpush1.bf16.msra.mxu0 %v955
      %1020 = vmatprep.subr.bf16.mxu0 0
      %1021 = vmatpush1.bf16.msra.mxu0 %v969
      %1022 = vmatprep.subr.bf16.mxu0 0
      %1023 = vmatpush1.bf16.msra.mxu0 0
      %1024 = vmatprep.subr.bf16.mxu0 0
      %1025 = vmatpush1.bf16.msra.mxu0 0
      %1026 = vmatprep.subr.bf16.mxu0 0
      %1027 = vmatpush1.bf16.msra.mxu0 0
      %1028 = vmatprep.subr.bf16.mxu0 0
      %1029 = vmatpush1.bf16.msra.mxu0 0
      %1030 = vmatprep.subr.bf16.mxu0 0
      %1031 = vmatpush1.bf16.msra.mxu0 0
      %1032 = vmatprep.subr.bf16.mxu0 0
      %1033 = vmatpush1.bf16.msra.mxu0 0
      %1034 = vmatprep.subr.bf16.mxu0 0
      %1035 = vmatpush1.bf16.msra.mxu0 0
      %1036 = vmatprep.subr.bf16.mxu0 0
      %1037 = vmatpush1.bf16.msra.mxu0 0
      %1038 = vmatprep.subr.bf16.mxu0 0
      %1039 = vmatpush1.bf16.msra.mxu0 0
      %1040 = vmatprep.subr.bf16.mxu0 0
      %1041 = vmatpush1.bf16.msra.mxu0 0
      %1042 = vmatprep.subr.bf16.mxu0 0
      %1043 = vmatpush1.bf16.msra.mxu0 0
      %1044 = vmatprep.mubr.bf16.mxu0 0
      %1045 = vmatmul.mubr.bf16.gmra.mrb[0].mxu0 %v960
      %v1046 = vpop.f32.mrb[0].mxu0
      %v1047 = vadd.f32 0.0, %v1046
      %v1048 = vpop.f32.mrb[0].mxu0
      %v1049 = vpop.f32.mrb[0].mxu0
      %v1050 = vpop.f32.mrb[0].mxu0
      %1051 = vdwg.mxu0
      %v1052 = vsel %vm574, %v1006, 0.0
      %v1053 = vsel %vm575, %v1008, 0.0
      %v1054 = vsel %vm576, %v1047, 0.0
      %v1055 = vadd.f32 %v1052, %v1053
      %v1056 = vadd.f32 %v1055, %v1054
      %1057 = vadd.xlane.f32.xlu0 %v1056
      %v1058 = vpop.xlane.xlu0 %1057
      %v1059 = vmul.f32 %v1052, %v1052
      %v1060 = vmul.f32 %v1053, %v1053
      %v1061 = vmul.f32 %v1054, %v1054
      %v1062 = vadd.f32 %v1059, %v1060
      %v1063 = vadd.f32 %v1062, %v1061
      %1064 = vadd.xlane.f32.xlu0 %v1063
      %v1065 = vpop.xlane.xlu0 %1064
      %v1066 = vmul.f32 %v1058, 0.00390625
      %v1067 = vmul.f32 %v1065, 0.00390625
      %v1068 = vmul.f32 %v1066, %v1066
      %v1069 = vsub.f32 %v1067, %v1068
      %v1070 = vmax.f32 %v1069, 0.0
      %v1071 = vsub.f32 %v1006, %v1066
      %v1072 = vsub.f32 %v1008, %v1066
      %v1073 = vsub.f32 %v1047, %v1066
      %v1074 = vadd.f32 %v1070, 1e-05
      %v1075 = vrsqrt.pop %v1074
      %v1076 = vmul.f32 %v1071, %v1075
      %v1077 = vmul.f32 %v1072, %v1075
      %v1078 = vmul.f32 %v1073, %v1075
      %v1079 = vld [vmem:[%s192 + $0x8] sm:$0xff]
      %v1080 = vld [vmem:[%s192 + $0x10] sm:$0xff]
      %v1081 = vld [vmem:[%s192 + $0x18] sm:$0xff]
      %v1082 = vadd.f32 %v1079, %v1076
      %v1083 = vadd.f32 %v1080, %v1077
      %v1084 = vadd.f32 %v1081, %v1078
      %1085 = vst [vmem:[%s197] sm:$0xff] %v1082
      %1086 = vst [vmem:[%s197 + $0x8] sm:$0xff] %v1083
      %1087 = vst [vmem:[%s197 + $0x10] sm:$0xff] %v1084
      %p1088 = scmp.lt.s32.totalorder %s15, 1
      %s1089 = scalar_select %p1088, %s15, 1
      %s1090 = smul.addr %s1089, 3
      %s1091 = smul.addr %s1090, 8
      %s1092 = scalar_lea.vmem %s4, %s1091
      // Predicated region
      $region37: #{residual_block.1} parent=35 // pred_check
        %p1093 = pneg %p122
      $region38: #{residual_block.1} parent=35 // pred_check_branch
        %1095 = sbr.rel (%p1093) target = $region40
      $region39: #{residual_block.1} parent=35 // pred_region
        _
      $region40: #{residual_block.1} parent=35 // pred_fallthru
        _
    $region36: #{residual_block.1} parent=5 // pred_fallthru
      _
    %p1096 = scmp.le.s32.totalorder 2, %s10
    // Predicated region
    $region41: #{residual_block.1} parent=5 // pred_check
      %p1097 = pneg %p1096
    $region42: #{residual_block.1} parent=5 // pred_check_branch
      %1099 = sbr.rel (%p1097) target = $region44
    $region43: #{residual_block.1} parent=5 // pred_region
      %s1100 = ssub.s32 %s10, 2
      // Predicated region
      $region45: #{residual_block.1} parent=43 // pred_check
        %p1101 = pneg %p128
      $region46: #{residual_block.1} parent=43 // pred_check_branch
        %1103 = sbr.rel (%p1101) target = $region48
      $region47: #{residual_block.1} parent=43 // pred_region
        %p1104 = scmp.lt.s32.totalorder %s16, 1
        %s1105 = scalar_select %p1104, %s16, 1
        %s1106 = smul.addr %s1105, 3
        %s1107 = smul.addr %s1106, 8
        %s1108 = scalar_lea.vmem %s4, %s1107
      $region48: #{residual_block.1} parent=43 // pred_fallthru
        _
    $region44: #{residual_block.1} parent=5 // pred_fallthru
      _
  $region6: #{residual_block.1} parent=0 // loop_footer
    %s14 = sadd.s32 1, %s10
  $region7: #{residual_block.1} parent=0 // loop_footer_branch
    %9 = sbr.rel target = $region3
  $region8: #{residual_block.1} parent=0 // loop_exit
    _

</llo_original>
